<compile_context>
chip_gen: v6e
topology: v6e:2x2x1
jax: 0.10.0
libtpu: 0.0.40
codegen_flags: <defaults>
</compile_context>

<pallas_src>
import jax
import jax.numpy as jnp
from jax import lax
from jax.experimental import pallas as pl
from jax.experimental.pallas import tpu as pltpu
import numpy as np

# ----------------------------- static problem sizes ------------------------------
K = 5                                   # conv kernel size
C1, H1, W1 = 3, 32, 32                  # conv1 input (flatten 16*5*5 implies 32x32)
CO1 = 6
HO1, WO1 = H1 - K + 1, W1 - K + 1       # 28, 28
HP1, WP1 = HO1 // 2, WO1 // 2           # 14, 14
C2, CO2 = CO1, 16
HO2, WO2 = HP1 - K + 1, WP1 - K + 1     # 10, 10
HP2, WP2 = HO2 // 2, WO2 // 2           # 5, 5
F_FLAT = CO2 * HP2 * WP2                # 400
D1, D2, D3 = 120, 84, 10

_CompilerParams = getattr(pltpu, "CompilerParams", None) or getattr(pltpu, "TPUCompilerParams")
_COMPILER_PARAMS = _CompilerParams(dimension_semantics=("parallel",))


# --------------------------------- fused kernel ----------------------------------
def _lenet_fused_kernel(x_ref, w1b_ref, b1_ref, w2b_ref, b2_ref,
                        wf1_ref, bf1_ref, wf2_ref, bf2_ref, wf3_ref, bf3_ref,
                        o_ref, fm1_ref):
    x = x_ref[0]                                    # (32, 96)  rows = H, lanes = (w, c)

    # ---- conv1: 5 row-shifted banded matmuls -> (28, 168); cols = (parity, pj, co) ----
    y1 = jnp.dot(x[0:HO1, :], w1b_ref[0], preferred_element_type=jnp.float32)
    for kh in range(1, K):
        y1 = y1 + jnp.dot(x[kh:kh + HO1, :], w1b_ref[kh],
                          preferred_element_type=jnp.float32)

    # ---- 2x2 max-pool: even/odd column halves (contiguous lane slices), then row
    #      pairs; one bias-add + ReLU per pooled row, written to the VMEM scratch ----
    half1 = WP1 * CO1                               # 84
    h1 = jnp.maximum(y1[:, 0:half1], y1[:, half1:2 * half1])        # (28, 84)
    b1 = b1_ref[...]                                                 # (1, 84)
    for pi in range(HP1):
        row = jnp.maximum(h1[2 * pi:2 * pi + 1, :], h1[2 * pi + 1:2 * pi + 2, :])
        fm1_ref[pi:pi + 1, :] = jnp.maximum(row + b1, 0.0)           # (1, 84)

    # ---- conv2: 5 banded matmuls over the pooled map -> (10, 160) ----
    y2 = jnp.dot(fm1_ref[0:HO2, :], w2b_ref[0], preferred_element_type=jnp.float32)
    for kh in range(1, K):
        y2 = y2 + jnp.dot(fm1_ref[kh:kh + HO2, :], w2b_ref[kh],
                          preferred_element_type=jnp.float32)

    # ---- pool2 + bias + ReLU, fused with the first FC layer (flatten permutation
    #      is absorbed into wf1, so each pooled row feeds one (1,80)@(80,120) dot) ----
    half2 = WP2 * CO2                               # 80
    h2 = jnp.maximum(y2[:, 0:half2], y2[:, half2:2 * half2])        # (10, 80)
    b2 = b2_ref[...]                                                 # (1, 80)
    acc = bf1_ref[...]                                               # (1, 120) fc1 bias
    for pi in range(HP2):
        row = jnp.maximum(h2[2 * pi:2 * pi + 1, :], h2[2 * pi + 1:2 * pi + 2, :])
        row = jnp.maximum(row + b2, 0.0)                             # (1, 80)
        acc = acc + jnp.dot(row, wf1_ref[pi * half2:(pi + 1) * half2, :],
                            preferred_element_type=jnp.float32)

    # ---- MLP tail ----
    h = jnp.maximum(acc, 0.0)                                                    # (1, 120)
    h = jnp.maximum(jnp.dot(h, wf2_ref[...], preferred_element_type=jnp.float32)
                    + bf2_ref[...], 0.0)                                         # (1, 84)
    o_ref[0] = (jnp.dot(h, wf3_ref[...], preferred_element_type=jnp.float32)
                + bf3_ref[...])                                                  # (1, 10)


# -------------------------- one-time host-side weight prep -----------------------
def prepare_params(params):
    """Pack PyTorch-layout parameters into the kernel's banded/permuted layout (run once)."""
    (w1, b1, w2, b2, fw1, fb1, fw2, fb2, fw3, fb3) = [np.asarray(p, np.float32) for p in params]

    def banded_conv_weight(w_oihw, w_in, wp):
        # (K, W_in*C_in, W_out*C_out); output column = dj*(wp*Co) + pj*Co + co with
        # j = 2*pj + dj, so the horizontal half of the 2x2 pool is a lane slice.
        co, ci = w_oihw.shape[0], w_oihw.shape[1]
        wo = w_in - K + 1
        wb = np.zeros((K, w_in * ci, wo * co), np.float32)
        for kh in range(K):
            for j in range(wo):
                pj, dj = j // 2, j % 2
                col0 = dj * (wp * co) + pj * co
                for kw in range(K):
                    w = j + kw
                    wb[kh, w * ci:(w + 1) * ci, col0:col0 + co] = w_oihw[:, :, kh, kw].T
        return wb

    w1b = banded_conv_weight(w1, W1, WP1)                       # (5, 96, 168)
    w2b = banded_conv_weight(w2, WP1, WP2)                      # (5, 84, 160)
    b1r = np.tile(b1, WP1)[None, :]                             # (1, 84)  lane = pj*6 + co
    b2r = np.tile(b2, WP2)[None, :]                             # (1, 80)  lane = pj*16 + o
    # func1 weight with the torch (o, ph, pw) flatten order mapped to our
    # (ph-block, pw*16 + o) feature order.
    wf1 = fw1.reshape(D1, CO2, HP2, WP2).transpose(2, 3, 1, 0).reshape(F_FLAT, D1)
    kp = (w1b, b1r, w2b, b2r,
          wf1, fb1[None, :],
          np.ascontiguousarray(fw2.T), fb2[None, :],
          np.ascontiguousarray(fw3.T), fb3[None, :])
    return tuple(jnp.asarray(a) for a in kp)


# ------------------------------------ wrapper -------------------------------------
def lenet_forward(x_nchw, kp):
    (w1b, b1r, w2b, b2r, wf1, bf1, wf2, bf2, wf3, bf3) = kp
    N = x_nchw.shape[0]
    # NCHW -> (N, H, W*C): rows = H (sublanes), lanes = (w, c).  Raw input read once.
    x_rows = jnp.transpose(x_nchw, (0, 2, 3, 1)).reshape(N, H1, W1 * C1)

    weights = (w1b, b1r, w2b, b2r, wf1, bf1, wf2, bf2, wf3, bf3)

    def wspec(a):
        nd = a.ndim
        return pl.BlockSpec(a.shape, lambda n, _nd=nd: (0,) * _nd)

    grid_spec = pltpu.PrefetchScalarGridSpec(
        num_scalar_prefetch=0,
        grid=(N,),
        in_specs=[pl.BlockSpec((1, H1, W1 * C1), lambda n: (n, 0, 0))]
                + [wspec(a) for a in weights],
        out_specs=pl.BlockSpec((1, 1, D3), lambda n: (n, 0, 0)),
        scratch_shapes=[pltpu.VMEM((HP1, WP1 * CO1), jnp.float32)],   # pooled fm1 (14, 84)
    )
    out = pl.pallas_call(
        _lenet_fused_kernel,
        out_shape=jax.ShapeDtypeStruct((N, 1, D3), jnp.float32),
        grid_spec=grid_spec,
        compiler_params=_COMPILER_PARAMS,
    )(x_rows, *weights)
    return out.reshape(N, D3)


# --------------------------- pure-JAX reference forward ---------------------------
def reference_forward(x, params):
    (w1, b1, w2, b2, fw1, fb1, fw2, fb2, fw3, fb3) = params
    hi = lax.Precision.HIGHEST

    def conv(h, w, b):
        y = lax.conv_general_dilated(h, w, (1, 1), 'VALID',
                                     dimension_numbers=('NCHW', 'OIHW', 'NCHW'),
                                     precision=hi)
        return y + b[None, :, None, None]

    def pool(h):
        return lax.reduce_window(h, -jnp.inf, lax.max,
                                 (1, 1, 2, 2), (1, 1, 2, 2), 'VALID')

    h = pool(jax.nn.relu(conv(x, w1, b1)))
    h = pool(jax.nn.relu(conv(h, w2, b2)))
    h = h.reshape(x.shape[0], -1)
    h = jax.nn.relu(jnp.dot(h, fw1.T, precision=hi) + fb1)
    h = jax.nn.relu(jnp.dot(h, fw2.T, precision=hi) + fb2)
    return jnp.dot(h, fw3.T, precision=hi) + fb3


if __name__ == "__main__":
    key = jax.random.PRNGKey(0)
    ks = jax.random.split(key, 11)
    # Deterministic synthetic parameters with the module's shapes (PyTorch layout).
    params = (
        0.1 * jax.random.normal(ks[0], (6, 3, 5, 5), jnp.float32),    # conv1.weight
        0.1 * jax.random.normal(ks[1], (6,), jnp.float32),            # conv1.bias
        0.1 * jax.random.normal(ks[2], (16, 6, 5, 5), jnp.float32),   # conv2.weight
        0.1 * jax.random.normal(ks[3], (16,), jnp.float32),           # conv2.bias
        0.1 * jax.random.normal(ks[4], (120, 400), jnp.float32),      # func1.weight
        0.1 * jax.random.normal(ks[5], (120,), jnp.float32),          # func1.bias
        0.1 * jax.random.normal(ks[6], (84, 120), jnp.float32),       # func2.weight
        0.1 * jax.random.normal(ks[7], (84,), jnp.float32),           # func2.bias
        0.1 * jax.random.normal(ks[8], (10, 84), jnp.float32),        # func3.weight
        0.1 * jax.random.normal(ks[9], (10,), jnp.float32),           # func3.bias
    )
    # The module's 16*5*5 flatten implies 32x32 RGB input; batch = 2.
    x = jax.random.normal(ks[10], (2, 3, 32, 32), jnp.float32)

    kp = prepare_params(params)                      # one-time weight packing
    fwd = jax.jit(lenet_forward)
    out = jax.block_until_ready(fwd(x, kp))
    ref = jax.block_until_ready(reference_forward(x, params))
    np.testing.assert_allclose(np.asarray(out), np.asarray(ref), rtol=1e-3, atol=1e-3)
    print("KERNEL_OK")
</pallas_src>

<mosaic_0001>
module attributes {stable_mosaic.version = 11 : i64} {
  func.func @_lenet_fused_kernel(%arg0: i32, %arg1: memref<1x32x96xf32, #tpu.memory_space<vmem>>, %arg2: memref<5x96x168xf32, #tpu.memory_space<vmem>>, %arg3: memref<1x84xf32, #tpu.memory_space<vmem>>, %arg4: memref<5x84x160xf32, #tpu.memory_space<vmem>>, %arg5: memref<1x80xf32, #tpu.memory_space<vmem>>, %arg6: memref<400x120xf32, #tpu.memory_space<vmem>>, %arg7: memref<1x120xf32, #tpu.memory_space<vmem>>, %arg8: memref<120x84xf32, #tpu.memory_space<vmem>>, %arg9: memref<1x84xf32, #tpu.memory_space<vmem>>, %arg10: memref<84x10xf32, #tpu.memory_space<vmem>>, %arg11: memref<1x10xf32, #tpu.memory_space<vmem>>, %arg12: memref<1x1x10xf32, #tpu.memory_space<vmem>>, %arg13: memref<14x84xf32, #tpu.memory_space<vmem>>) attributes {dimension_semantics = [#tpu.dimension_semantics<parallel>], iteration_bounds = array<i64: 2>, scalar_prefetch = 0 : i64, scratch_operands = 1 : i64, tpu.core_type = #tpu.core_type<tc>, window_params = [{transform_indices = @transform_0, window_bounds = array<i64: 1, 32, 96>}, {pipeline_mode = #tpu.pipeline_mode<synchronous>, transform_indices = @transform_1, window_bounds = array<i64: 5, 96, 168>}, {pipeline_mode = #tpu.pipeline_mode<synchronous>, transform_indices = @transform_2, window_bounds = array<i64: 1, 84>}, {pipeline_mode = #tpu.pipeline_mode<synchronous>, transform_indices = @transform_3, window_bounds = array<i64: 5, 84, 160>}, {pipeline_mode = #tpu.pipeline_mode<synchronous>, transform_indices = @transform_4, window_bounds = array<i64: 1, 80>}, {pipeline_mode = #tpu.pipeline_mode<synchronous>, transform_indices = @transform_5, window_bounds = array<i64: 400, 120>}, {pipeline_mode = #tpu.pipeline_mode<synchronous>, transform_indices = @transform_6, window_bounds = array<i64: 1, 120>}, {pipeline_mode = #tpu.pipeline_mode<synchronous>, transform_indices = @transform_7, window_bounds = array<i64: 120, 84>}, {pipeline_mode = #tpu.pipeline_mode<synchronous>, transform_indices = @transform_8, window_bounds = array<i64: 1, 84>}, {pipeline_mode = #tpu.pipeline_mode<synchronous>, transform_indices = @transform_9, window_bounds = array<i64: 84, 10>}, {pipeline_mode = #tpu.pipeline_mode<synchronous>, transform_indices = @transform_10, window_bounds = array<i64: 1, 10>}, {transform_indices = @transform_11, window_bounds = array<i64: 1, 1, 10>}]} {
    %c0 = arith.constant 0 : index
    %c0_0 = arith.constant 0 : index
    %c0_1 = arith.constant 0 : index
    %0 = vector.load %arg1[%c0, %c0_0, %c0_1] : memref<1x32x96xf32, #tpu.memory_space<vmem>>, vector<1x32x96xf32>
    %1 = vector.shape_cast %0 : vector<1x32x96xf32> to vector<32x96xf32>
    %2 = vector.extract_strided_slice %1 {offsets = [0, 0], sizes = [28, 96], strides = [1, 1]} : vector<32x96xf32> to vector<28x96xf32>
    %c0_2 = arith.constant 0 : index
    %c0_3 = arith.constant 0 : index
    %c0_4 = arith.constant 0 : index
    %3 = vector.load %arg2[%c0_2, %c0_3, %c0_4] : memref<5x96x168xf32, #tpu.memory_space<vmem>>, vector<1x96x168xf32>
    %4 = vector.shape_cast %3 : vector<1x96x168xf32> to vector<96x168xf32>
    %cst = arith.constant dense<0.000000e+00> : vector<28x168xf32>
    %5 = tpu.matmul %2, %4, %cst {dimension_numbers = #tpu.dot_dimension_numbers<[1], [0], [0], [1], [0, 0, 1, 1], [], []>} : vector<28x96xf32>, vector<96x168xf32>, vector<28x168xf32> -> vector<28x168xf32>
    %6 = vector.extract_strided_slice %1 {offsets = [1, 0], sizes = [28, 96], strides = [1, 1]} : vector<32x96xf32> to vector<28x96xf32>
    %c1 = arith.constant 1 : index
    %c0_5 = arith.constant 0 : index
    %c0_6 = arith.constant 0 : index
    %7 = vector.load %arg2[%c1, %c0_5, %c0_6] : memref<5x96x168xf32, #tpu.memory_space<vmem>>, vector<1x96x168xf32>
    %8 = vector.shape_cast %7 : vector<1x96x168xf32> to vector<96x168xf32>
    %cst_7 = arith.constant dense<0.000000e+00> : vector<28x168xf32>
    %9 = tpu.matmul %6, %8, %cst_7 {dimension_numbers = #tpu.dot_dimension_numbers<[1], [0], [0], [1], [0, 0, 1, 1], [], []>} : vector<28x96xf32>, vector<96x168xf32>, vector<28x168xf32> -> vector<28x168xf32>
    %10 = arith.addf %5, %9 : vector<28x168xf32>
    %11 = vector.extract_strided_slice %1 {offsets = [2, 0], sizes = [28, 96], strides = [1, 1]} : vector<32x96xf32> to vector<28x96xf32>
    %c2 = arith.constant 2 : index
    %c0_8 = arith.constant 0 : index
    %c0_9 = arith.constant 0 : index
    %12 = vector.load %arg2[%c2, %c0_8, %c0_9] : memref<5x96x168xf32, #tpu.memory_space<vmem>>, vector<1x96x168xf32>
    %13 = vector.shape_cast %12 : vector<1x96x168xf32> to vector<96x168xf32>
    %cst_10 = arith.constant dense<0.000000e+00> : vector<28x168xf32>
    %14 = tpu.matmul %11, %13, %cst_10 {dimension_numbers = #tpu.dot_dimension_numbers<[1], [0], [0], [1], [0, 0, 1, 1], [], []>} : vector<28x96xf32>, vector<96x168xf32>, vector<28x168xf32> -> vector<28x168xf32>
    %15 = arith.addf %10, %14 : vector<28x168xf32>
    %16 = vector.extract_strided_slice %1 {offsets = [3, 0], sizes = [28, 96], strides = [1, 1]} : vector<32x96xf32> to vector<28x96xf32>
    %c3 = arith.constant 3 : index
    %c0_11 = arith.constant 0 : index
    %c0_12 = arith.constant 0 : index
    %17 = vector.load %arg2[%c3, %c0_11, %c0_12] : memref<5x96x168xf32, #tpu.memory_space<vmem>>, vector<1x96x168xf32>
    %18 = vector.shape_cast %17 : vector<1x96x168xf32> to vector<96x168xf32>
    %cst_13 = arith.constant dense<0.000000e+00> : vector<28x168xf32>
    %19 = tpu.matmul %16, %18, %cst_13 {dimension_numbers = #tpu.dot_dimension_numbers<[1], [0], [0], [1], [0, 0, 1, 1], [], []>} : vector<28x96xf32>, vector<96x168xf32>, vector<28x168xf32> -> vector<28x168xf32>
    %20 = arith.addf %15, %19 : vector<28x168xf32>
    %21 = vector.extract_strided_slice %1 {offsets = [4, 0], sizes = [28, 96], strides = [1, 1]} : vector<32x96xf32> to vector<28x96xf32>
    %c4 = arith.constant 4 : index
    %c0_14 = arith.constant 0 : index
    %c0_15 = arith.constant 0 : index
    %22 = vector.load %arg2[%c4, %c0_14, %c0_15] : memref<5x96x168xf32, #tpu.memory_space<vmem>>, vector<1x96x168xf32>
    %23 = vector.shape_cast %22 : vector<1x96x168xf32> to vector<96x168xf32>
    %cst_16 = arith.constant dense<0.000000e+00> : vector<28x168xf32>
    %24 = tpu.matmul %21, %23, %cst_16 {dimension_numbers = #tpu.dot_dimension_numbers<[1], [0], [0], [1], [0, 0, 1, 1], [], []>} : vector<28x96xf32>, vector<96x168xf32>, vector<28x168xf32> -> vector<28x168xf32>
    %25 = arith.addf %20, %24 : vector<28x168xf32>
    %26 = vector.extract_strided_slice %25 {offsets = [0, 0], sizes = [28, 84], strides = [1, 1]} : vector<28x168xf32> to vector<28x84xf32>
    %27 = vector.extract_strided_slice %25 {offsets = [0, 84], sizes = [28, 84], strides = [1, 1]} : vector<28x168xf32> to vector<28x84xf32>
    %28 = arith.maximumf %26, %27 : vector<28x84xf32>
    %c0_17 = arith.constant 0 : index
    %c0_18 = arith.constant 0 : index
    %29 = vector.load %arg3[%c0_17, %c0_18] : memref<1x84xf32, #tpu.memory_space<vmem>>, vector<1x84xf32>
    %30 = vector.extract_strided_slice %28 {offsets = [0, 0], sizes = [1, 84], strides = [1, 1]} : vector<28x84xf32> to vector<1x84xf32>
    %31 = vector.extract_strided_slice %28 {offsets = [1, 0], sizes = [1, 84], strides = [1, 1]} : vector<28x84xf32> to vector<1x84xf32>
    %32 = arith.maximumf %30, %31 : vector<1x84xf32>
    %33 = arith.addf %32, %29 : vector<1x84xf32>
    %cst_19 = arith.constant 0.000000e+00 : f32
    %34 = vector.broadcast %cst_19 : f32 to vector<1x84xf32>
    %35 = arith.maximumf %33, %34 : vector<1x84xf32>
    %c0_20 = arith.constant 0 : index
    %c0_21 = arith.constant 0 : index
    %36 = vector.load %arg13[%c0_20, %c0_21] : memref<14x84xf32, #tpu.memory_space<vmem>>, vector<1x84xf32>
    tpu.vector_store %arg13[%c0_20, %c0_21], %35 {strides = array<i32>} : memref<14x84xf32, #tpu.memory_space<vmem>>, vector<1x84xf32>,
    %37 = vector.extract_strided_slice %28 {offsets = [2, 0], sizes = [1, 84], strides = [1, 1]} : vector<28x84xf32> to vector<1x84xf32>
    %38 = vector.extract_strided_slice %28 {offsets = [3, 0], sizes = [1, 84], strides = [1, 1]} : vector<28x84xf32> to vector<1x84xf32>
    %39 = arith.maximumf %37, %38 : vector<1x84xf32>
    %40 = arith.addf %39, %29 : vector<1x84xf32>
    %cst_22 = arith.constant 0.000000e+00 : f32
    %41 = vector.broadcast %cst_22 : f32 to vector<1x84xf32>
    %42 = arith.maximumf %40, %41 : vector<1x84xf32>
    %c1_23 = arith.constant 1 : index
    %c0_24 = arith.constant 0 : index
    %43 = vector.load %arg13[%c1_23, %c0_24] : memref<14x84xf32, #tpu.memory_space<vmem>>, vector<1x84xf32>
    tpu.vector_store %arg13[%c1_23, %c0_24], %42 {strides = array<i32>} : memref<14x84xf32, #tpu.memory_space<vmem>>, vector<1x84xf32>,
    %44 = vector.extract_strided_slice %28 {offsets = [4, 0], sizes = [1, 84], strides = [1, 1]} : vector<28x84xf32> to vector<1x84xf32>
    %45 = vector.extract_strided_slice %28 {offsets = [5, 0], sizes = [1, 84], strides = [1, 1]} : vector<28x84xf32> to vector<1x84xf32>
    %46 = arith.maximumf %44, %45 : vector<1x84xf32>
    %47 = arith.addf %46, %29 : vector<1x84xf32>
    %cst_25 = arith.constant 0.000000e+00 : f32
    %48 = vector.broadcast %cst_25 : f32 to vector<1x84xf32>
    %49 = arith.maximumf %47, %48 : vector<1x84xf32>
    %c2_26 = arith.constant 2 : index
    %c0_27 = arith.constant 0 : index
    %50 = vector.load %arg13[%c2_26, %c0_27] : memref<14x84xf32, #tpu.memory_space<vmem>>, vector<1x84xf32>
    tpu.vector_store %arg13[%c2_26, %c0_27], %49 {strides = array<i32>} : memref<14x84xf32, #tpu.memory_space<vmem>>, vector<1x84xf32>,
    %51 = vector.extract_strided_slice %28 {offsets = [6, 0], sizes = [1, 84], strides = [1, 1]} : vector<28x84xf32> to vector<1x84xf32>
    %52 = vector.extract_strided_slice %28 {offsets = [7, 0], sizes = [1, 84], strides = [1, 1]} : vector<28x84xf32> to vector<1x84xf32>
    %53 = arith.maximumf %51, %52 : vector<1x84xf32>
    %54 = arith.addf %53, %29 : vector<1x84xf32>
    %cst_28 = arith.constant 0.000000e+00 : f32
    %55 = vector.broadcast %cst_28 : f32 to vector<1x84xf32>
    %56 = arith.maximumf %54, %55 : vector<1x84xf32>
    %c3_29 = arith.constant 3 : index
    %c0_30 = arith.constant 0 : index
    %57 = vector.load %arg13[%c3_29, %c0_30] : memref<14x84xf32, #tpu.memory_space<vmem>>, vector<1x84xf32>
    tpu.vector_store %arg13[%c3_29, %c0_30], %56 {strides = array<i32>} : memref<14x84xf32, #tpu.memory_space<vmem>>, vector<1x84xf32>,
    %58 = vector.extract_strided_slice %28 {offsets = [8, 0], sizes = [1, 84], strides = [1, 1]} : vector<28x84xf32> to vector<1x84xf32>
    %59 = vector.extract_strided_slice %28 {offsets = [9, 0], sizes = [1, 84], strides = [1, 1]} : vector<28x84xf32> to vector<1x84xf32>
    %60 = arith.maximumf %58, %59 : vector<1x84xf32>
    %61 = arith.addf %60, %29 : vector<1x84xf32>
    %cst_31 = arith.constant 0.000000e+00 : f32
    %62 = vector.broadcast %cst_31 : f32 to vector<1x84xf32>
    %63 = arith.maximumf %61, %62 : vector<1x84xf32>
    %c4_32 = arith.constant 4 : index
    %c0_33 = arith.constant 0 : index
    %64 = vector.load %arg13[%c4_32, %c0_33] : memref<14x84xf32, #tpu.memory_space<vmem>>, vector<1x84xf32>
    tpu.vector_store %arg13[%c4_32, %c0_33], %63 {strides = array<i32>} : memref<14x84xf32, #tpu.memory_space<vmem>>, vector<1x84xf32>,
    %65 = vector.extract_strided_slice %28 {offsets = [10, 0], sizes = [1, 84], strides = [1, 1]} : vector<28x84xf32> to vector<1x84xf32>
    %66 = vector.extract_strided_slice %28 {offsets = [11, 0], sizes = [1, 84], strides = [1, 1]} : vector<28x84xf32> to vector<1x84xf32>
    %67 = arith.maximumf %65, %66 : vector<1x84xf32>
    %68 = arith.addf %67, %29 : vector<1x84xf32>
    %cst_34 = arith.constant 0.000000e+00 : f32
    %69 = vector.broadcast %cst_34 : f32 to vector<1x84xf32>
    %70 = arith.maximumf %68, %69 : vector<1x84xf32>
    %c5 = arith.constant 5 : index
    %c0_35 = arith.constant 0 : index
    %71 = vector.load %arg13[%c5, %c0_35] : memref<14x84xf32, #tpu.memory_space<vmem>>, vector<1x84xf32>
    tpu.vector_store %arg13[%c5, %c0_35], %70 {strides = array<i32>} : memref<14x84xf32, #tpu.memory_space<vmem>>, vector<1x84xf32>,
    %72 = vector.extract_strided_slice %28 {offsets = [12, 0], sizes = [1, 84], strides = [1, 1]} : vector<28x84xf32> to vector<1x84xf32>
    %73 = vector.extract_strided_slice %28 {offsets = [13, 0], sizes = [1, 84], strides = [1, 1]} : vector<28x84xf32> to vector<1x84xf32>
    %74 = arith.maximumf %72, %73 : vector<1x84xf32>
    %75 = arith.addf %74, %29 : vector<1x84xf32>
    %cst_36 = arith.constant 0.000000e+00 : f32
    %76 = vector.broadcast %cst_36 : f32 to vector<1x84xf32>
    %77 = arith.maximumf %75, %76 : vector<1x84xf32>
    %c6 = arith.constant 6 : index
    %c0_37 = arith.constant 0 : index
    %78 = vector.load %arg13[%c6, %c0_37] : memref<14x84xf32, #tpu.memory_space<vmem>>, vector<1x84xf32>
    tpu.vector_store %arg13[%c6, %c0_37], %77 {strides = array<i32>} : memref<14x84xf32, #tpu.memory_space<vmem>>, vector<1x84xf32>,
    %79 = vector.extract_strided_slice %28 {offsets = [14, 0], sizes = [1, 84], strides = [1, 1]} : vector<28x84xf32> to vector<1x84xf32>
    %80 = vector.extract_strided_slice %28 {offsets = [15, 0], sizes = [1, 84], strides = [1, 1]} : vector<28x84xf32> to vector<1x84xf32>
    %81 = arith.maximumf %79, %80 : vector<1x84xf32>
    %82 = arith.addf %81, %29 : vector<1x84xf32>
    %cst_38 = arith.constant 0.000000e+00 : f32
    %83 = vector.broadcast %cst_38 : f32 to vector<1x84xf32>
    %84 = arith.maximumf %82, %83 : vector<1x84xf32>
    %c7 = arith.constant 7 : index
    %c0_39 = arith.constant 0 : index
    %85 = vector.load %arg13[%c7, %c0_39] : memref<14x84xf32, #tpu.memory_space<vmem>>, vector<1x84xf32>
    tpu.vector_store %arg13[%c7, %c0_39], %84 {strides = array<i32>} : memref<14x84xf32, #tpu.memory_space<vmem>>, vector<1x84xf32>,
    %86 = vector.extract_strided_slice %28 {offsets = [16, 0], sizes = [1, 84], strides = [1, 1]} : vector<28x84xf32> to vector<1x84xf32>
    %87 = vector.extract_strided_slice %28 {offsets = [17, 0], sizes = [1, 84], strides = [1, 1]} : vector<28x84xf32> to vector<1x84xf32>
    %88 = arith.maximumf %86, %87 : vector<1x84xf32>
    %89 = arith.addf %88, %29 : vector<1x84xf32>
    %cst_40 = arith.constant 0.000000e+00 : f32
    %90 = vector.broadcast %cst_40 : f32 to vector<1x84xf32>
    %91 = arith.maximumf %89, %90 : vector<1x84xf32>
    %c8 = arith.constant 8 : index
    %c0_41 = arith.constant 0 : index
    %92 = vector.load %arg13[%c8, %c0_41] : memref<14x84xf32, #tpu.memory_space<vmem>>, vector<1x84xf32>
    tpu.vector_store %arg13[%c8, %c0_41], %91 {strides = array<i32>} : memref<14x84xf32, #tpu.memory_space<vmem>>, vector<1x84xf32>,
    %93 = vector.extract_strided_slice %28 {offsets = [18, 0], sizes = [1, 84], strides = [1, 1]} : vector<28x84xf32> to vector<1x84xf32>
    %94 = vector.extract_strided_slice %28 {offsets = [19, 0], sizes = [1, 84], strides = [1, 1]} : vector<28x84xf32> to vector<1x84xf32>
    %95 = arith.maximumf %93, %94 : vector<1x84xf32>
    %96 = arith.addf %95, %29 : vector<1x84xf32>
    %cst_42 = arith.constant 0.000000e+00 : f32
    %97 = vector.broadcast %cst_42 : f32 to vector<1x84xf32>
    %98 = arith.maximumf %96, %97 : vector<1x84xf32>
    %c9 = arith.constant 9 : index
    %c0_43 = arith.constant 0 : index
    %99 = vector.load %arg13[%c9, %c0_43] : memref<14x84xf32, #tpu.memory_space<vmem>>, vector<1x84xf32>
    tpu.vector_store %arg13[%c9, %c0_43], %98 {strides = array<i32>} : memref<14x84xf32, #tpu.memory_space<vmem>>, vector<1x84xf32>,
    %100 = vector.extract_strided_slice %28 {offsets = [20, 0], sizes = [1, 84], strides = [1, 1]} : vector<28x84xf32> to vector<1x84xf32>
    %101 = vector.extract_strided_slice %28 {offsets = [21, 0], sizes = [1, 84], strides = [1, 1]} : vector<28x84xf32> to vector<1x84xf32>
    %102 = arith.maximumf %100, %101 : vector<1x84xf32>
    %103 = arith.addf %102, %29 : vector<1x84xf32>
    %cst_44 = arith.constant 0.000000e+00 : f32
    %104 = vector.broadcast %cst_44 : f32 to vector<1x84xf32>
    %105 = arith.maximumf %103, %104 : vector<1x84xf32>
    %c10 = arith.constant 10 : index
    %c0_45 = arith.constant 0 : index
    %106 = vector.load %arg13[%c10, %c0_45] : memref<14x84xf32, #tpu.memory_space<vmem>>, vector<1x84xf32>
    tpu.vector_store %arg13[%c10, %c0_45], %105 {strides = array<i32>} : memref<14x84xf32, #tpu.memory_space<vmem>>, vector<1x84xf32>,
    %107 = vector.extract_strided_slice %28 {offsets = [22, 0], sizes = [1, 84], strides = [1, 1]} : vector<28x84xf32> to vector<1x84xf32>
    %108 = vector.extract_strided_slice %28 {offsets = [23, 0], sizes = [1, 84], strides = [1, 1]} : vector<28x84xf32> to vector<1x84xf32>
    %109 = arith.maximumf %107, %108 : vector<1x84xf32>
    %110 = arith.addf %109, %29 : vector<1x84xf32>
    %cst_46 = arith.constant 0.000000e+00 : f32
    %111 = vector.broadcast %cst_46 : f32 to vector<1x84xf32>
    %112 = arith.maximumf %110, %111 : vector<1x84xf32>
    %c11 = arith.constant 11 : index
    %c0_47 = arith.constant 0 : index
    %113 = vector.load %arg13[%c11, %c0_47] : memref<14x84xf32, #tpu.memory_space<vmem>>, vector<1x84xf32>
    tpu.vector_store %arg13[%c11, %c0_47], %112 {strides = array<i32>} : memref<14x84xf32, #tpu.memory_space<vmem>>, vector<1x84xf32>,
    %114 = vector.extract_strided_slice %28 {offsets = [24, 0], sizes = [1, 84], strides = [1, 1]} : vector<28x84xf32> to vector<1x84xf32>
    %115 = vector.extract_strided_slice %28 {offsets = [25, 0], sizes = [1, 84], strides = [1, 1]} : vector<28x84xf32> to vector<1x84xf32>
    %116 = arith.maximumf %114, %115 : vector<1x84xf32>
    %117 = arith.addf %116, %29 : vector<1x84xf32>
    %cst_48 = arith.constant 0.000000e+00 : f32
    %118 = vector.broadcast %cst_48 : f32 to vector<1x84xf32>
    %119 = arith.maximumf %117, %118 : vector<1x84xf32>
    %c12 = arith.constant 12 : index
    %c0_49 = arith.constant 0 : index
    %120 = vector.load %arg13[%c12, %c0_49] : memref<14x84xf32, #tpu.memory_space<vmem>>, vector<1x84xf32>
    tpu.vector_store %arg13[%c12, %c0_49], %119 {strides = array<i32>} : memref<14x84xf32, #tpu.memory_space<vmem>>, vector<1x84xf32>,
    %121 = vector.extract_strided_slice %28 {offsets = [26, 0], sizes = [1, 84], strides = [1, 1]} : vector<28x84xf32> to vector<1x84xf32>
    %122 = vector.extract_strided_slice %28 {offsets = [27, 0], sizes = [1, 84], strides = [1, 1]} : vector<28x84xf32> to vector<1x84xf32>
    %123 = arith.maximumf %121, %122 : vector<1x84xf32>
    %124 = arith.addf %123, %29 : vector<1x84xf32>
    %cst_50 = arith.constant 0.000000e+00 : f32
    %125 = vector.broadcast %cst_50 : f32 to vector<1x84xf32>
    %126 = arith.maximumf %124, %125 : vector<1x84xf32>
    %c13 = arith.constant 13 : index
    %c0_51 = arith.constant 0 : index
    %127 = vector.load %arg13[%c13, %c0_51] : memref<14x84xf32, #tpu.memory_space<vmem>>, vector<1x84xf32>
    tpu.vector_store %arg13[%c13, %c0_51], %126 {strides = array<i32>} : memref<14x84xf32, #tpu.memory_space<vmem>>, vector<1x84xf32>,
    %c0_52 = arith.constant 0 : index
    %c0_53 = arith.constant 0 : index
    %128 = vector.load %arg13[%c0_52, %c0_53] : memref<14x84xf32, #tpu.memory_space<vmem>>, vector<10x84xf32>
    %c0_54 = arith.constant 0 : index
    %c0_55 = arith.constant 0 : index
    %c0_56 = arith.constant 0 : index
    %129 = vector.load %arg4[%c0_54, %c0_55, %c0_56] : memref<5x84x160xf32, #tpu.memory_space<vmem>>, vector<1x84x160xf32>
    %130 = vector.shape_cast %129 : vector<1x84x160xf32> to vector<84x160xf32>
    %cst_57 = arith.constant dense<0.000000e+00> : vector<10x160xf32>
    %131 = tpu.matmul %128, %130, %cst_57 {dimension_numbers = #tpu.dot_dimension_numbers<[1], [0], [0], [1], [0, 0, 1, 1], [], []>} : vector<10x84xf32>, vector<84x160xf32>, vector<10x160xf32> -> vector<10x160xf32>
    %c1_58 = arith.constant 1 : index
    %c0_59 = arith.constant 0 : index
    %132 = vector.load %arg13[%c1_58, %c0_59] : memref<14x84xf32, #tpu.memory_space<vmem>>, vector<10x84xf32>
    %c1_60 = arith.constant 1 : index
    %c0_61 = arith.constant 0 : index
    %c0_62 = arith.constant 0 : index
    %133 = vector.load %arg4[%c1_60, %c0_61, %c0_62] : memref<5x84x160xf32, #tpu.memory_space<vmem>>, vector<1x84x160xf32>
    %134 = vector.shape_cast %133 : vector<1x84x160xf32> to vector<84x160xf32>
    %cst_63 = arith.constant dense<0.000000e+00> : vector<10x160xf32>
    %135 = tpu.matmul %132, %134, %cst_63 {dimension_numbers = #tpu.dot_dimension_numbers<[1], [0], [0], [1], [0, 0, 1, 1], [], []>} : vector<10x84xf32>, vector<84x160xf32>, vector<10x160xf32> -> vector<10x160xf32>
    %136 = arith.addf %131, %135 : vector<10x160xf32>
    %c2_64 = arith.constant 2 : index
    %c0_65 = arith.constant 0 : index
    %137 = vector.load %arg13[%c2_64, %c0_65] : memref<14x84xf32, #tpu.memory_space<vmem>>, vector<10x84xf32>
    %c2_66 = arith.constant 2 : index
    %c0_67 = arith.constant 0 : index
    %c0_68 = arith.constant 0 : index
    %138 = vector.load %arg4[%c2_66, %c0_67, %c0_68] : memref<5x84x160xf32, #tpu.memory_space<vmem>>, vector<1x84x160xf32>
    %139 = vector.shape_cast %138 : vector<1x84x160xf32> to vector<84x160xf32>
    %cst_69 = arith.constant dense<0.000000e+00> : vector<10x160xf32>
    %140 = tpu.matmul %137, %139, %cst_69 {dimension_numbers = #tpu.dot_dimension_numbers<[1], [0], [0], [1], [0, 0, 1, 1], [], []>} : vector<10x84xf32>, vector<84x160xf32>, vector<10x160xf32> -> vector<10x160xf32>
    %141 = arith.addf %136, %140 : vector<10x160xf32>
    %c3_70 = arith.constant 3 : index
    %c0_71 = arith.constant 0 : index
    %142 = vector.load %arg13[%c3_70, %c0_71] : memref<14x84xf32, #tpu.memory_space<vmem>>, vector<10x84xf32>
    %c3_72 = arith.constant 3 : index
    %c0_73 = arith.constant 0 : index
    %c0_74 = arith.constant 0 : index
    %143 = vector.load %arg4[%c3_72, %c0_73, %c0_74] : memref<5x84x160xf32, #tpu.memory_space<vmem>>, vector<1x84x160xf32>
    %144 = vector.shape_cast %143 : vector<1x84x160xf32> to vector<84x160xf32>
    %cst_75 = arith.constant dense<0.000000e+00> : vector<10x160xf32>
    %145 = tpu.matmul %142, %144, %cst_75 {dimension_numbers = #tpu.dot_dimension_numbers<[1], [0], [0], [1], [0, 0, 1, 1], [], []>} : vector<10x84xf32>, vector<84x160xf32>, vector<10x160xf32> -> vector<10x160xf32>
    %146 = arith.addf %141, %145 : vector<10x160xf32>
    %c4_76 = arith.constant 4 : index
    %c0_77 = arith.constant 0 : index
    %147 = vector.load %arg13[%c4_76, %c0_77] : memref<14x84xf32, #tpu.memory_space<vmem>>, vector<10x84xf32>
    %c4_78 = arith.constant 4 : index
    %c0_79 = arith.constant 0 : index
    %c0_80 = arith.constant 0 : index
    %148 = vector.load %arg4[%c4_78, %c0_79, %c0_80] : memref<5x84x160xf32, #tpu.memory_space<vmem>>, vector<1x84x160xf32>
    %149 = vector.shape_cast %148 : vector<1x84x160xf32> to vector<84x160xf32>
    %cst_81 = arith.constant dense<0.000000e+00> : vector<10x160xf32>
    %150 = tpu.matmul %147, %149, %cst_81 {dimension_numbers = #tpu.dot_dimension_numbers<[1], [0], [0], [1], [0, 0, 1, 1], [], []>} : vector<10x84xf32>, vector<84x160xf32>, vector<10x160xf32> -> vector<10x160xf32>
    %151 = arith.addf %146, %150 : vector<10x160xf32>
    %152 = vector.extract_strided_slice %151 {offsets = [0, 0], sizes = [10, 80], strides = [1, 1]} : vector<10x160xf32> to vector<10x80xf32>
    %153 = vector.extract_strided_slice %151 {offsets = [0, 80], sizes = [10, 80], strides = [1, 1]} : vector<10x160xf32> to vector<10x80xf32>
    %154 = arith.maximumf %152, %153 : vector<10x80xf32>
    %c0_82 = arith.constant 0 : index
    %c0_83 = arith.constant 0 : index
    %155 = vector.load %arg5[%c0_82, %c0_83] : memref<1x80xf32, #tpu.memory_space<vmem>>, vector<1x80xf32>
    %c0_84 = arith.constant 0 : index
    %c0_85 = arith.constant 0 : index
    %156 = vector.load %arg7[%c0_84, %c0_85] : memref<1x120xf32, #tpu.memory_space<vmem>>, vector<1x120xf32>
    %157 = vector.extract_strided_slice %154 {offsets = [0, 0], sizes = [1, 80], strides = [1, 1]} : vector<10x80xf32> to vector<1x80xf32>
    %158 = vector.extract_strided_slice %154 {offsets = [1, 0], sizes = [1, 80], strides = [1, 1]} : vector<10x80xf32> to vector<1x80xf32>
    %159 = arith.maximumf %157, %158 : vector<1x80xf32>
    %160 = arith.addf %159, %155 : vector<1x80xf32>
    %cst_86 = arith.constant 0.000000e+00 : f32
    %161 = vector.broadcast %cst_86 : f32 to vector<1x80xf32>
    %162 = arith.maximumf %160, %161 : vector<1x80xf32>
    %c0_87 = arith.constant 0 : index
    %c0_88 = arith.constant 0 : index
    %163 = vector.load %arg6[%c0_87, %c0_88] : memref<400x120xf32, #tpu.memory_space<vmem>>, vector<80x120xf32>
    %cst_89 = arith.constant dense<0.000000e+00> : vector<1x120xf32>
    %164 = tpu.matmul %162, %163, %cst_89 {dimension_numbers = #tpu.dot_dimension_numbers<[1], [0], [0], [1], [0, 0, 1, 1], [], []>} : vector<1x80xf32>, vector<80x120xf32>, vector<1x120xf32> -> vector<1x120xf32>
    %165 = arith.addf %156, %164 : vector<1x120xf32>
    %166 = vector.extract_strided_slice %154 {offsets = [2, 0], sizes = [1, 80], strides = [1, 1]} : vector<10x80xf32> to vector<1x80xf32>
    %167 = vector.extract_strided_slice %154 {offsets = [3, 0], sizes = [1, 80], strides = [1, 1]} : vector<10x80xf32> to vector<1x80xf32>
    %168 = arith.maximumf %166, %167 : vector<1x80xf32>
    %169 = arith.addf %168, %155 : vector<1x80xf32>
    %cst_90 = arith.constant 0.000000e+00 : f32
    %170 = vector.broadcast %cst_90 : f32 to vector<1x80xf32>
    %171 = arith.maximumf %169, %170 : vector<1x80xf32>
    %c80 = arith.constant 80 : index
    %c0_91 = arith.constant 0 : index
    %172 = vector.load %arg6[%c80, %c0_91] : memref<400x120xf32, #tpu.memory_space<vmem>>, vector<80x120xf32>
    %cst_92 = arith.constant dense<0.000000e+00> : vector<1x120xf32>
    %173 = tpu.matmul %171, %172, %cst_92 {dimension_numbers = #tpu.dot_dimension_numbers<[1], [0], [0], [1], [0, 0, 1, 1], [], []>} : vector<1x80xf32>, vector<80x120xf32>, vector<1x120xf32> -> vector<1x120xf32>
    %174 = arith.addf %165, %173 : vector<1x120xf32>
    %175 = vector.extract_strided_slice %154 {offsets = [4, 0], sizes = [1, 80], strides = [1, 1]} : vector<10x80xf32> to vector<1x80xf32>
    %176 = vector.extract_strided_slice %154 {offsets = [5, 0], sizes = [1, 80], strides = [1, 1]} : vector<10x80xf32> to vector<1x80xf32>
    %177 = arith.maximumf %175, %176 : vector<1x80xf32>
    %178 = arith.addf %177, %155 : vector<1x80xf32>
    %cst_93 = arith.constant 0.000000e+00 : f32
    %179 = vector.broadcast %cst_93 : f32 to vector<1x80xf32>
    %180 = arith.maximumf %178, %179 : vector<1x80xf32>
    %c160 = arith.constant 160 : index
    %c0_94 = arith.constant 0 : index
    %181 = vector.load %arg6[%c160, %c0_94] : memref<400x120xf32, #tpu.memory_space<vmem>>, vector<80x120xf32>
    %cst_95 = arith.constant dense<0.000000e+00> : vector<1x120xf32>
    %182 = tpu.matmul %180, %181, %cst_95 {dimension_numbers = #tpu.dot_dimension_numbers<[1], [0], [0], [1], [0, 0, 1, 1], [], []>} : vector<1x80xf32>, vector<80x120xf32>, vector<1x120xf32> -> vector<1x120xf32>
    %183 = arith.addf %174, %182 : vector<1x120xf32>
    %184 = vector.extract_strided_slice %154 {offsets = [6, 0], sizes = [1, 80], strides = [1, 1]} : vector<10x80xf32> to vector<1x80xf32>
    %185 = vector.extract_strided_slice %154 {offsets = [7, 0], sizes = [1, 80], strides = [1, 1]} : vector<10x80xf32> to vector<1x80xf32>
    %186 = arith.maximumf %184, %185 : vector<1x80xf32>
    %187 = arith.addf %186, %155 : vector<1x80xf32>
    %cst_96 = arith.constant 0.000000e+00 : f32
    %188 = vector.broadcast %cst_96 : f32 to vector<1x80xf32>
    %189 = arith.maximumf %187, %188 : vector<1x80xf32>
    %c240 = arith.constant 240 : index
    %c0_97 = arith.constant 0 : index
    %190 = vector.load %arg6[%c240, %c0_97] : memref<400x120xf32, #tpu.memory_space<vmem>>, vector<80x120xf32>
    %cst_98 = arith.constant dense<0.000000e+00> : vector<1x120xf32>
    %191 = tpu.matmul %189, %190, %cst_98 {dimension_numbers = #tpu.dot_dimension_numbers<[1], [0], [0], [1], [0, 0, 1, 1], [], []>} : vector<1x80xf32>, vector<80x120xf32>, vector<1x120xf32> -> vector<1x120xf32>
    %192 = arith.addf %183, %191 : vector<1x120xf32>
    %193 = vector.extract_strided_slice %154 {offsets = [8, 0], sizes = [1, 80], strides = [1, 1]} : vector<10x80xf32> to vector<1x80xf32>
    %194 = vector.extract_strided_slice %154 {offsets = [9, 0], sizes = [1, 80], strides = [1, 1]} : vector<10x80xf32> to vector<1x80xf32>
    %195 = arith.maximumf %193, %194 : vector<1x80xf32>
    %196 = arith.addf %195, %155 : vector<1x80xf32>
    %cst_99 = arith.constant 0.000000e+00 : f32
    %197 = vector.broadcast %cst_99 : f32 to vector<1x80xf32>
    %198 = arith.maximumf %196, %197 : vector<1x80xf32>
    %c320 = arith.constant 320 : index
    %c0_100 = arith.constant 0 : index
    %199 = vector.load %arg6[%c320, %c0_100] : memref<400x120xf32, #tpu.memory_space<vmem>>, vector<80x120xf32>
    %cst_101 = arith.constant dense<0.000000e+00> : vector<1x120xf32>
    %200 = tpu.matmul %198, %199, %cst_101 {dimension_numbers = #tpu.dot_dimension_numbers<[1], [0], [0], [1], [0, 0, 1, 1], [], []>} : vector<1x80xf32>, vector<80x120xf32>, vector<1x120xf32> -> vector<1x120xf32>
    %201 = arith.addf %192, %200 : vector<1x120xf32>
    %cst_102 = arith.constant 0.000000e+00 : f32
    %202 = vector.broadcast %cst_102 : f32 to vector<1x120xf32>
    %203 = arith.maximumf %201, %202 : vector<1x120xf32>
    %c0_103 = arith.constant 0 : index
    %c0_104 = arith.constant 0 : index
    %204 = vector.load %arg8[%c0_103, %c0_104] : memref<120x84xf32, #tpu.memory_space<vmem>>, vector<120x84xf32>
    %cst_105 = arith.constant dense<0.000000e+00> : vector<1x84xf32>
    %205 = tpu.matmul %203, %204, %cst_105 {dimension_numbers = #tpu.dot_dimension_numbers<[1], [0], [0], [1], [0, 0, 1, 1], [], []>} : vector<1x120xf32>, vector<120x84xf32>, vector<1x84xf32> -> vector<1x84xf32>
    %c0_106 = arith.constant 0 : index
    %c0_107 = arith.constant 0 : index
    %206 = vector.load %arg9[%c0_106, %c0_107] : memref<1x84xf32, #tpu.memory_space<vmem>>, vector<1x84xf32>
    %207 = arith.addf %205, %206 : vector<1x84xf32>
    %cst_108 = arith.constant 0.000000e+00 : f32
    %208 = vector.broadcast %cst_108 : f32 to vector<1x84xf32>
    %209 = arith.maximumf %207, %208 : vector<1x84xf32>
    %c0_109 = arith.constant 0 : index
    %c0_110 = arith.constant 0 : index
    %210 = vector.load %arg10[%c0_109, %c0_110] : memref<84x10xf32, #tpu.memory_space<vmem>>, vector<84x10xf32>
    %cst_111 = arith.constant dense<0.000000e+00> : vector<1x10xf32>
    %211 = tpu.matmul %209, %210, %cst_111 {dimension_numbers = #tpu.dot_dimension_numbers<[1], [0], [0], [1], [0, 0, 1, 1], [], []>} : vector<1x84xf32>, vector<84x10xf32>, vector<1x10xf32> -> vector<1x10xf32>
    %c0_112 = arith.constant 0 : index
    %c0_113 = arith.constant 0 : index
    %212 = vector.load %arg11[%c0_112, %c0_113] : memref<1x10xf32, #tpu.memory_space<vmem>>, vector<1x10xf32>
    %213 = arith.addf %211, %212 : vector<1x10xf32>
    %c0_114 = arith.constant 0 : index
    %c0_115 = arith.constant 0 : index
    %c0_116 = arith.constant 0 : index
    %214 = vector.load %arg12[%c0_114, %c0_115, %c0_116] : memref<1x1x10xf32, #tpu.memory_space<vmem>>, vector<1x1x10xf32>
    %215 = vector.shape_cast %214 : vector<1x1x10xf32> to vector<1x10xf32>
    %216 = vector.shape_cast %213 : vector<1x10xf32> to vector<1x1x10xf32>
    tpu.vector_store %arg12[%c0_114, %c0_115, %c0_116], %216 {strides = array<i32>} : memref<1x1x10xf32, #tpu.memory_space<vmem>>, vector<1x1x10xf32>,
    return
  }
  func.func @transform_0(%arg0: i32) -> (i32, i32, i32) {
    %c0_i32 = arith.constant 0 : i32
    %c0_i32_0 = arith.constant 0 : i32
    %c0_i32_1 = arith.constant 0 : i32
    return %arg0, %c0_i32, %c0_i32_0 : i32, i32, i32
  }
  func.func @transform_1(%arg0: i32) -> (i32, i32, i32) {
    %c0_i32 = arith.constant 0 : i32
    %c0_i32_0 = arith.constant 0 : i32
    %c0_i32_1 = arith.constant 0 : i32
    %c0_i32_2 = arith.constant 0 : i32
    return %c0_i32, %c0_i32_0, %c0_i32_1 : i32, i32, i32
  }
  func.func @transform_2(%arg0: i32) -> (i32, i32) {
    %c0_i32 = arith.constant 0 : i32
    %c0_i32_0 = arith.constant 0 : i32
    %c0_i32_1 = arith.constant 0 : i32
    return %c0_i32, %c0_i32_0 : i32, i32
  }
  func.func @transform_3(%arg0: i32) -> (i32, i32, i32) {
    %c0_i32 = arith.constant 0 : i32
    %c0_i32_0 = arith.constant 0 : i32
    %c0_i32_1 = arith.constant 0 : i32
    %c0_i32_2 = arith.constant 0 : i32
    return %c0_i32, %c0_i32_0, %c0_i32_1 : i32, i32, i32
  }
  func.func @transform_4(%arg0: i32) -> (i32, i32) {
    %c0_i32 = arith.constant 0 : i32
    %c0_i32_0 = arith.constant 0 : i32
    %c0_i32_1 = arith.constant 0 : i32
    return %c0_i32, %c0_i32_0 : i32, i32
  }
  func.func @transform_5(%arg0: i32) -> (i32, i32) {
    %c0_i32 = arith.constant 0 : i32
    %c0_i32_0 = arith.constant 0 : i32
    %c0_i32_1 = arith.constant 0 : i32
    return %c0_i32, %c0_i32_0 : i32, i32
  }
  func.func @transform_6(%arg0: i32) -> (i32, i32) {
    %c0_i32 = arith.constant 0 : i32
    %c0_i32_0 = arith.constant 0 : i32
    %c0_i32_1 = arith.constant 0 : i32
    return %c0_i32, %c0_i32_0 : i32, i32
  }
  func.func @transform_7(%arg0: i32) -> (i32, i32) {
    %c0_i32 = arith.constant 0 : i32
    %c0_i32_0 = arith.constant 0 : i32
    %c0_i32_1 = arith.constant 0 : i32
    return %c0_i32, %c0_i32_0 : i32, i32
  }
  func.func @transform_8(%arg0: i32) -> (i32, i32) {
    %c0_i32 = arith.constant 0 : i32
    %c0_i32_0 = arith.constant 0 : i32
    %c0_i32_1 = arith.constant 0 : i32
    return %c0_i32, %c0_i32_0 : i32, i32
  }
  func.func @transform_9(%arg0: i32) -> (i32, i32) {
    %c0_i32 = arith.constant 0 : i32
    %c0_i32_0 = arith.constant 0 : i32
    %c0_i32_1 = arith.constant 0 : i32
    return %c0_i32, %c0_i32_0 : i32, i32
  }
  func.func @transform_10(%arg0: i32) -> (i32, i32) {
    %c0_i32 = arith.constant 0 : i32
    %c0_i32_0 = arith.constant 0 : i32
    %c0_i32_1 = arith.constant 0 : i32
    return %c0_i32, %c0_i32_0 : i32, i32
  }
  func.func @transform_11(%arg0: i32) -> (i32, i32, i32) {
    %c0_i32 = arith.constant 0 : i32
    %c0_i32_0 = arith.constant 0 : i32
    %c0_i32_1 = arith.constant 0 : i32
    return %arg0, %c0_i32, %c0_i32_0 : i32, i32, i32
  }
}

</mosaic_0001>

<llo_original>
// kernel: lenet_forward.1
$region0: #{lenet_forward.1}
  #allocation0 [shape = 'u32[]', space=smem, size = 0x4, offset = 0x4, fixed_abs, tag = 'smem constant byte address 0x4 - core index']
  #allocation1 [shape = 'u32[144,128]{1,0:T(1,128)}', space=vmem, size = 0x12000, scoped, tag = 'internal scratch']
  #allocation2 [shape = 'f32[14,84]{1,0:T(8,128)}', space=vmem, size = 0x2000, scoped, tag = 'scratch operand']
  %s0 = inlined_call_operand.vmem [shape: f32[2,32,96], index: 0, kind: input, shape index: {}]
  %s1 = inlined_call_operand.vmem [shape: f32[5,96,168], index: 1, kind: input, shape index: {}]
  %s2 = inlined_call_operand.vmem [shape: f32[1,84], index: 2, kind: input, shape index: {}]
  %s3 = inlined_call_operand.vmem [shape: f32[5,84,160], index: 3, kind: input, shape index: {}]
  %s4 = inlined_call_operand.vmem [shape: f32[1,80], index: 4, kind: input, shape index: {}]
  %s5 = inlined_call_operand.vmem [shape: f32[400,120], index: 5, kind: input, shape index: {}]
  %s6 = inlined_call_operand.vmem [shape: f32[1,120], index: 6, kind: input, shape index: {}]
  %s7 = inlined_call_operand.vmem [shape: f32[120,84], index: 7, kind: input, shape index: {}]
  %s8 = inlined_call_operand.vmem [shape: f32[1,84], index: 8, kind: input, shape index: {}]
  %s9 = inlined_call_operand.vmem [shape: f32[84,10], index: 9, kind: input, shape index: {}]
  %s10 = inlined_call_operand.vmem [shape: f32[1,10], index: 10, kind: input, shape index: {}]
  %s11 = inlined_call_operand.hbm [shape: f32[2,1,10], index: 11, kind: output, shape index: {}]
  %s12 = sld [smem:[#allocation0]]
  $region77: #{lenet_forward.1} parent=0
    _
  %s14 = ssub.s32 1, %s12
  %s15 = scalar_select 0, %s14, %s12
  $region1: #{lenet_forward.1} parent=0
    #allocation3 [shape = 'u8[1024]{0}', space=vmem, size = 0x400, scoped, tag = 'output window, operand 0']
    #allocation4 [shape = 's32[2]{0}', space=sflag, size = 0x8, scoped, tag = 'scoped memory for lenet_forward.1']
    %16 = vsyncpa [#allocation4], 0
    %s17 = scalar_lea.sflag [#allocation4], 1
    %18 = vsyncpa %s17, 0
    loop: start=0, step=1, limit=4
    $region2: #{lenet_forward.1} parent=1 // loop_pre_header
      _
    $region3: #{lenet_forward.1} parent=1 // loop_header
      %s20 = sphi 0, %s24
      %p21 = scmp.ge.s32.totalorder %s20, 4
      %s30 = sphi 0, %s32
      %s33 = sphi 0, %s30
      %s34 = sphi 0, %s33
      %s50 = sphi 0, %s34
      %s54 = sphi 0, %s54
      %s56 = sphi 0, %s54
      %s57 = sphi 0, %s56
      %s71 = sphi 0, %s57
      %s75 = sphi 0, %s75
      %s77 = sphi 0, %s75
      %s78 = sphi 0, %s77
      %s92 = sphi 0, %s78
      %s96 = sphi 0, %s96
      %s98 = sphi 0, %s96
      %s99 = sphi 0, %s98
      %s113 = sphi 0, %s99
      %s117 = sphi 0, %s117
      %s119 = sphi 0, %s117
      %s120 = sphi 0, %s119
      %s134 = sphi 0, %s120
      %s138 = sphi 0, %s138
      %s140 = sphi 0, %s138
      %s141 = sphi 0, %s140
      %s155 = sphi 0, %s141
      %s159 = sphi 0, %s159
      %s161 = sphi 0, %s159
      %s162 = sphi 0, %s161
      %s176 = sphi 0, %s162
      %s180 = sphi 0, %s180
      %s182 = sphi 0, %s180
      %s183 = sphi 0, %s182
      %s197 = sphi 0, %s183
      %s201 = sphi 0, %s201
      %s203 = sphi 0, %s201
      %s204 = sphi 0, %s203
      %s218 = sphi 0, %s204
      %s222 = sphi 0, %s222
      %s224 = sphi 0, %s222
      %s225 = sphi 0, %s224
      %s239 = sphi 0, %s225
      %s243 = sphi 0, %s243
      %s245 = sphi 0, %s243
      %s246 = sphi 0, %s245
      %s260 = sphi 0, %s246
      %s266 = sphi 0, %s268
      %s269 = sphi 0, %s266
      %s270 = sphi 0, %s269
      %s286 = sphi 0, %s270
    $region4: #{lenet_forward.1} parent=1 // loop_header_branch
      %23 = sbr.rel (%p21) target = $region8
    $region5: #{lenet_forward.1} parent=1 // loop_body
      %s25 = ssub.s32 %s20, 1
      %s26 = ssub.s32 %s20, 2
      %s27 = sadd.s32 %s20, 1
      %s28 = ssub.s32 %s20, %s27
      %p29 = scmp.eq.s32.totalorder %s28, 0
      %s31 = sadd.s32 %s30, 1
      %s32 = scalar_select %p29, %s30, %s31
      %p35 = pneg %p29
      %p36 = scmp.eq.s32.totalorder %s20, 1
      %p37 = por %p35, %p36
      %p38 = scmp.ne.s32.totalorder %s30, %s33
      %p39 = scmp.eq.s32.totalorder %s20, 0
      %p40 = por %p38, %p39
      %p41 = scmp.ne.s32.totalorder %s30, %s33
      %p42 = scmp.eq.s32.totalorder %s25, 1
      %p43 = por %p41, %p42
      %p44 = scmp.ne.s32.totalorder %s33, %s34
      %p45 = scmp.eq.s32.totalorder %s25, 0
      %p46 = por %p44, %p45
      %p47 = scmp.ne.s32.totalorder %s33, %s34
      %p48 = scmp.eq.s32.totalorder %s26, 1
      %p49 = por %p47, %p48
      %p51 = scmp.ne.s32.totalorder %s34, %s50
      %p52 = scmp.eq.s32.totalorder %s26, 0
      %p53 = por %p51, %p52
      %s55 = sadd.s32 %s54, 1
      %p58 = scmp.eq.s32.totalorder %s20, 1
      %p59 = scmp.ne.s32.totalorder %s54, %s56
      %p60 = scmp.eq.s32.totalorder %s20, 0
      %p61 = por %p59, %p60
      %p62 = scmp.ne.s32.totalorder %s54, %s56
      %p63 = scmp.eq.s32.totalorder %s25, 1
      %p64 = por %p62, %p63
      %p65 = scmp.ne.s32.totalorder %s56, %s57
      %p66 = scmp.eq.s32.totalorder %s25, 0
      %p67 = por %p65, %p66
      %p68 = scmp.ne.s32.totalorder %s56, %s57
      %p69 = scmp.eq.s32.totalorder %s26, 1
      %p70 = por %p68, %p69
      %p72 = scmp.ne.s32.totalorder %s57, %s71
      %p73 = scmp.eq.s32.totalorder %s26, 0
      %p74 = por %p72, %p73
      %s76 = sadd.s32 %s75, 1
      %p79 = scmp.eq.s32.totalorder %s20, 1
      %p80 = scmp.ne.s32.totalorder %s75, %s77
      %p81 = scmp.eq.s32.totalorder %s20, 0
      %p82 = por %p80, %p81
      %p83 = scmp.ne.s32.totalorder %s75, %s77
      %p84 = scmp.eq.s32.totalorder %s25, 1
      %p85 = por %p83, %p84
      %p86 = scmp.ne.s32.totalorder %s77, %s78
      %p87 = scmp.eq.s32.totalorder %s25, 0
      %p88 = por %p86, %p87
      %p89 = scmp.ne.s32.totalorder %s77, %s78
      %p90 = scmp.eq.s32.totalorder %s26, 1
      %p91 = por %p89, %p90
      %p93 = scmp.ne.s32.totalorder %s78, %s92
      %p94 = scmp.eq.s32.totalorder %s26, 0
      %p95 = por %p93, %p94
      %s97 = sadd.s32 %s96, 1
      %p100 = scmp.eq.s32.totalorder %s20, 1
      %p101 = scmp.ne.s32.totalorder %s96, %s98
      %p102 = scmp.eq.s32.totalorder %s20, 0
      %p103 = por %p101, %p102
      %p104 = scmp.ne.s32.totalorder %s96, %s98
      %p105 = scmp.eq.s32.totalorder %s25, 1
      %p106 = por %p104, %p105
      %p107 = scmp.ne.s32.totalorder %s98, %s99
      %p108 = scmp.eq.s32.totalorder %s25, 0
      %p109 = por %p107, %p108
      %p110 = scmp.ne.s32.totalorder %s98, %s99
      %p111 = scmp.eq.s32.totalorder %s26, 1
      %p112 = por %p110, %p111
      %p114 = scmp.ne.s32.totalorder %s99, %s113
      %p115 = scmp.eq.s32.totalorder %s26, 0
      %p116 = por %p114, %p115
      %s118 = sadd.s32 %s117, 1
      %p121 = scmp.eq.s32.totalorder %s20, 1
      %p122 = scmp.ne.s32.totalorder %s117, %s119
      %p123 = scmp.eq.s32.totalorder %s20, 0
      %p124 = por %p122, %p123
      %p125 = scmp.ne.s32.totalorder %s117, %s119
      %p126 = scmp.eq.s32.totalorder %s25, 1
      %p127 = por %p125, %p126
      %p128 = scmp.ne.s32.totalorder %s119, %s120
      %p129 = scmp.eq.s32.totalorder %s25, 0
      %p130 = por %p128, %p129
      %p131 = scmp.ne.s32.totalorder %s119, %s120
      %p132 = scmp.eq.s32.totalorder %s26, 1
      %p133 = por %p131, %p132
      %p135 = scmp.ne.s32.totalorder %s120, %s134
      %p136 = scmp.eq.s32.totalorder %s26, 0
      %p137 = por %p135, %p136
      %s139 = sadd.s32 %s138, 1
      %p142 = scmp.eq.s32.totalorder %s20, 1
      %p143 = scmp.ne.s32.totalorder %s138, %s140
      %p144 = scmp.eq.s32.totalorder %s20, 0
      %p145 = por %p143, %p144
      %p146 = scmp.ne.s32.totalorder %s138, %s140
      %p147 = scmp.eq.s32.totalorder %s25, 1
      %p148 = por %p146, %p147
      %p149 = scmp.ne.s32.totalorder %s140, %s141
      %p150 = scmp.eq.s32.totalorder %s25, 0
      %p151 = por %p149, %p150
      %p152 = scmp.ne.s32.totalorder %s140, %s141
      %p153 = scmp.eq.s32.totalorder %s26, 1
      %p154 = por %p152, %p153
      %p156 = scmp.ne.s32.totalorder %s141, %s155
      %p157 = scmp.eq.s32.totalorder %s26, 0
      %p158 = por %p156, %p157
      %s160 = sadd.s32 %s159, 1
      %p163 = scmp.eq.s32.totalorder %s20, 1
      %p164 = scmp.ne.s32.totalorder %s159, %s161
      %p165 = scmp.eq.s32.totalorder %s20, 0
      %p166 = por %p164, %p165
      %p167 = scmp.ne.s32.totalorder %s159, %s161
      %p168 = scmp.eq.s32.totalorder %s25, 1
      %p169 = por %p167, %p168
      %p170 = scmp.ne.s32.totalorder %s161, %s162
      %p171 = scmp.eq.s32.totalorder %s25, 0
      %p172 = por %p170, %p171
      %p173 = scmp.ne.s32.totalorder %s161, %s162
      %p174 = scmp.eq.s32.totalorder %s26, 1
      %p175 = por %p173, %p174
      %p177 = scmp.ne.s32.totalorder %s162, %s176
      %p178 = scmp.eq.s32.totalorder %s26, 0
      %p179 = por %p177, %p178
      %s181 = sadd.s32 %s180, 1
      %p184 = scmp.eq.s32.totalorder %s20, 1
      %p185 = scmp.ne.s32.totalorder %s180, %s182
      %p186 = scmp.eq.s32.totalorder %s20, 0
      %p187 = por %p185, %p186
      %p188 = scmp.ne.s32.totalorder %s180, %s182
      %p189 = scmp.eq.s32.totalorder %s25, 1
      %p190 = por %p188, %p189
      %p191 = scmp.ne.s32.totalorder %s182, %s183
      %p192 = scmp.eq.s32.totalorder %s25, 0
      %p193 = por %p191, %p192
      %p194 = scmp.ne.s32.totalorder %s182, %s183
      %p195 = scmp.eq.s32.totalorder %s26, 1
      %p196 = por %p194, %p195
      %p198 = scmp.ne.s32.totalorder %s183, %s197
      %p199 = scmp.eq.s32.totalorder %s26, 0
      %p200 = por %p198, %p199
      %s202 = sadd.s32 %s201, 1
      %p205 = scmp.eq.s32.totalorder %s20, 1
      %p206 = scmp.ne.s32.totalorder %s201, %s203
      %p207 = scmp.eq.s32.totalorder %s20, 0
      %p208 = por %p206, %p207
      %p209 = scmp.ne.s32.totalorder %s201, %s203
      %p210 = scmp.eq.s32.totalorder %s25, 1
      %p211 = por %p209, %p210
      %p212 = scmp.ne.s32.totalorder %s203, %s204
      %p213 = scmp.eq.s32.totalorder %s25, 0
      %p214 = por %p212, %p213
      %p215 = scmp.ne.s32.totalorder %s203, %s204
      %p216 = scmp.eq.s32.totalorder %s26, 1
      %p217 = por %p215, %p216
      %p219 = scmp.ne.s32.totalorder %s204, %s218
      %p220 = scmp.eq.s32.totalorder %s26, 0
      %p221 = por %p219, %p220
      %s223 = sadd.s32 %s222, 1
      %p226 = scmp.eq.s32.totalorder %s20, 1
      %p227 = scmp.ne.s32.totalorder %s222, %s224
      %p228 = scmp.eq.s32.totalorder %s20, 0
      %p229 = por %p227, %p228
      %p230 = scmp.ne.s32.totalorder %s222, %s224
      %p231 = scmp.eq.s32.totalorder %s25, 1
      %p232 = por %p230, %p231
      %p233 = scmp.ne.s32.totalorder %s224, %s225
      %p234 = scmp.eq.s32.totalorder %s25, 0
      %p235 = por %p233, %p234
      %p236 = scmp.ne.s32.totalorder %s224, %s225
      %p237 = scmp.eq.s32.totalorder %s26, 1
      %p238 = por %p236, %p237
      %p240 = scmp.ne.s32.totalorder %s225, %s239
      %p241 = scmp.eq.s32.totalorder %s26, 0
      %p242 = por %p240, %p241
      %s244 = sadd.s32 %s243, 1
      %p247 = scmp.eq.s32.totalorder %s20, 1
      %p248 = scmp.ne.s32.totalorder %s243, %s245
      %p249 = scmp.eq.s32.totalorder %s20, 0
      %p250 = por %p248, %p249
      %p251 = scmp.ne.s32.totalorder %s243, %s245
      %p252 = scmp.eq.s32.totalorder %s25, 1
      %p253 = por %p251, %p252
      %p254 = scmp.ne.s32.totalorder %s245, %s246
      %p255 = scmp.eq.s32.totalorder %s25, 0
      %p256 = por %p254, %p255
      %p257 = scmp.ne.s32.totalorder %s245, %s246
      %p258 = scmp.eq.s32.totalorder %s26, 1
      %p259 = por %p257, %p258
      %p261 = scmp.ne.s32.totalorder %s246, %s260
      %p262 = scmp.eq.s32.totalorder %s26, 0
      %p263 = por %p261, %p262
      %s264 = ssub.s32 %s20, %s27
      %p265 = scmp.eq.s32.totalorder %s264, 0
      %s267 = sadd.s32 %s266, 1
      %s268 = scalar_select %p265, %s266, %s267
      %p271 = pneg %p265
      %p272 = scmp.eq.s32.totalorder %s20, 1
      %p273 = por %p271, %p272
      %p274 = scmp.ne.s32.totalorder %s266, %s269
      %p275 = scmp.eq.s32.totalorder %s20, 0
      %p276 = por %p274, %p275
      %p277 = scmp.ne.s32.totalorder %s266, %s269
      %p278 = scmp.eq.s32.totalorder %s25, 1
      %p279 = por %p277, %p278
      %p280 = scmp.ne.s32.totalorder %s269, %s270
      %p281 = scmp.eq.s32.totalorder %s25, 0
      %p282 = por %p280, %p281
      %p283 = scmp.ne.s32.totalorder %s269, %s270
      %p284 = scmp.eq.s32.totalorder %s26, 1
      %p285 = por %p283, %p284
      %p287 = scmp.ne.s32.totalorder %s270, %s286
      %p288 = scmp.eq.s32.totalorder %s26, 0
      %p289 = por %p287, %p288
      %p290 = scmp.le.s32.totalorder 1, %s20
      %p291 = scmp.lt.s32.totalorder %s20, 3
      %p292 = pnand %p290, %p291
      %p293 = pneg %p292
      // Predicated region
      $region9: #{lenet_forward.1} parent=5 // pred_check
        _
      $region10: #{lenet_forward.1} parent=5 // pred_check_branch
        %295 = sbr.rel (%p292) target = $region12
      $region11: #{lenet_forward.1} parent=5 // pred_region
        %s296 = ssub.s32 %s20, 1
        // Predicated region
        $region13: #{lenet_forward.1} parent=11 // pred_check
          %p297 = pneg %p67
        $region14: #{lenet_forward.1} parent=11 // pred_check_branch
          %299 = sbr.rel (%p297) target = $region16
        $region15: #{lenet_forward.1} parent=11 // pred_region
          _
        $region16: #{lenet_forward.1} parent=11 // pred_fallthru
          _
        // Predicated region
        $region17: #{lenet_forward.1} parent=11 // pred_check
          %p300 = pneg %p88
        $region18: #{lenet_forward.1} parent=11 // pred_check_branch
          %302 = sbr.rel (%p300) target = $region20
        $region19: #{lenet_forward.1} parent=11 // pred_region
          _
        $region20: #{lenet_forward.1} parent=11 // pred_fallthru
          _
        // Predicated region
        $region21: #{lenet_forward.1} parent=11 // pred_check
          %p303 = pneg %p109
        $region22: #{lenet_forward.1} parent=11 // pred_check_branch
          %305 = sbr.rel (%p303) target = $region24
        $region23: #{lenet_forward.1} parent=11 // pred_region
          _
        $region24: #{lenet_forward.1} parent=11 // pred_fallthru
          _
        // Predicated region
        $region25: #{lenet_forward.1} parent=11 // pred_check
          %p306 = pneg %p130
        $region26: #{lenet_forward.1} parent=11 // pred_check_branch
          %308 = sbr.rel (%p306) target = $region28
        $region27: #{lenet_forward.1} parent=11 // pred_region
          _
        $region28: #{lenet_forward.1} parent=11 // pred_fallthru
          _
        // Predicated region
        $region29: #{lenet_forward.1} parent=11 // pred_check
          %p309 = pneg %p151
        $region30: #{lenet_forward.1} parent=11 // pred_check_branch
          %311 = sbr.rel (%p309) target = $region32
        $region31: #{lenet_forward.1} parent=11 // pred_region
          _
        $region32: #{lenet_forward.1} parent=11 // pred_fallthru
          _
        // Predicated region
        $region33: #{lenet_forward.1} parent=11 // pred_check
          %p312 = pneg %p172
        $region34: #{lenet_forward.1} parent=11 // pred_check_branch
          %314 = sbr.rel (%p312) target = $region36
        $region35: #{lenet_forward.1} parent=11 // pred_region
          _
        $region36: #{lenet_forward.1} parent=11 // pred_fallthru
          _
        // Predicated region
        $region37: #{lenet_forward.1} parent=11 // pred_check
          %p315 = pneg %p193
        $region38: #{lenet_forward.1} parent=11 // pred_check_branch
          %317 = sbr.rel (%p315) target = $region40
        $region39: #{lenet_forward.1} parent=11 // pred_region
          _
        $region40: #{lenet_forward.1} parent=11 // pred_fallthru
          _
        // Predicated region
        $region41: #{lenet_forward.1} parent=11 // pred_check
          %p318 = pneg %p214
        $region42: #{lenet_forward.1} parent=11 // pred_check_branch
          %320 = sbr.rel (%p318) target = $region44
        $region43: #{lenet_forward.1} parent=11 // pred_region
          _
        $region44: #{lenet_forward.1} parent=11 // pred_fallthru
          _
        // Predicated region
        $region45: #{lenet_forward.1} parent=11 // pred_check
          %p321 = pneg %p235
        $region46: #{lenet_forward.1} parent=11 // pred_check_branch
          %323 = sbr.rel (%p321) target = $region48
        $region47: #{lenet_forward.1} parent=11 // pred_region
          _
        $region48: #{lenet_forward.1} parent=11 // pred_fallthru
          _
        // Predicated region
        $region49: #{lenet_forward.1} parent=11 // pred_check
          %p324 = pneg %p256
        $region50: #{lenet_forward.1} parent=11 // pred_check_branch
          %326 = sbr.rel (%p324) target = $region52
        $region51: #{lenet_forward.1} parent=11 // pred_region
          _
        $region52: #{lenet_forward.1} parent=11 // pred_fallthru
          _
      $region12: #{lenet_forward.1} parent=5 // pred_fallthru
        _
      %p327 = scmp.lt.s32.totalorder %s20, 2
      // Predicated region
      $region53: #{lenet_forward.1} parent=5 // pred_check
        %p328 = pneg %p327
      $region54: #{lenet_forward.1} parent=5 // pred_check_branch
        %330 = sbr.rel (%p328) target = $region56
      $region55: #{lenet_forward.1} parent=5 // pred_region
        // Predicated region
        $region57: #{lenet_forward.1} parent=55 // pred_check
          %p331 = pneg %p40
        $region58: #{lenet_forward.1} parent=55 // pred_check_branch
          %333 = sbr.rel (%p331) target = $region60
        $region59: #{lenet_forward.1} parent=55 // pred_region
          %p334 = scmp.lt.s32.totalorder %s20, 1
          %s335 = scalar_select %p334, %s20, 1
          %s336 = smul.addr %s335, 4
          %s337 = smul.addr %s336, 8
          %s338 = scalar_lea.vmem %s0, %s337
        $region60: #{lenet_forward.1} parent=55 // pred_fallthru
          _
      $region56: #{lenet_forward.1} parent=5 // pred_fallthru
        _
      %p339 = scmp.le.s32.totalorder 1, %s20
      %p340 = scmp.lt.s32.totalorder %s20, 3
      %p341 = pnand %p339, %p340
      %p342 = pneg %p341
      // Predicated region
      $region61: #{lenet_forward.1} parent=5 // pred_check
        _
      $region62: #{lenet_forward.1} parent=5 // pred_check_branch
        %344 = sbr.rel (%p341) target = $region64
      $region63: #{lenet_forward.1} parent=5 // pred_region
        %s345 = ssub.s32 %s20, 1
        %p346 = scmp.lt.s32.totalorder %s25, 1
        %s347 = scalar_select %p346, %s25, 1
        %s348 = smul.addr %s347, 4
        %s349 = smul.addr %s348, 8
        %s350 = scalar_lea.vmem %s0, %s349
        %p351 = pneg %p46
        %p352 = pneg %p43
        %p353 = pneg %p67
        %p354 = pneg %p64
        %p355 = pneg %p88
        %p356 = pneg %p85
        %p357 = pneg %p109
        %p358 = pneg %p106
        %p359 = pneg %p130
        %p360 = pneg %p127
        %p361 = pneg %p151
        %p362 = pneg %p148
        %p363 = pneg %p172
        %p364 = pneg %p169
        %p365 = pneg %p193
        %p366 = pneg %p190
        %p367 = pneg %p214
        %p368 = pneg %p211
        %p369 = pneg %p235
        %p370 = pneg %p232
        %p371 = pneg %p256
        %p372 = pneg %p253
        %p373 = pneg %p282
        %p374 = pneg %p279
        %s375 = sand.u32 %s269, 1
        %s376 = scalar_lea.sflag [#allocation4], %s375
        %s377 = sand.u32 %s269, 1
        %s378 = scalar_lea.vmem [#allocation3], %s377
        %p379 = scmp.lt.s32.totalorder %s25, 1
        %s380 = scalar_select %p379, %s25, 1
        %s381 = smul.addr %s380, 4
        %s382 = smul.addr %s381, 8
        %s383 = scalar_lea.vmem %s0, %s382
        %v384 = vld [vmem:[%s383] sm:$0xff]
        %v385 = vld [vmem:[%s383 + $0x8] sm:$0xff]
        %v386 = vld [vmem:[%s383 + $0x10] sm:$0xff]
        %v387 = vld [vmem:[%s383 + $0x18] sm:$0xff]
        %v388 = vld [vmem:[%s1] sm:$0xff]
        %v389 = vld [vmem:[%s1 + $0x8] sm:$0xff]
        %v390 = vld [vmem:[%s1 + $0x10] sm:$0xff]
        %v391 = vld [vmem:[%s1 + $0x18] sm:$0xff]
        %v392 = vld [vmem:[%s1 + $0x20] sm:$0xff]
        %v393 = vld [vmem:[%s1 + $0x28] sm:$0xff]
        %v394 = vld [vmem:[%s1 + $0x30] sm:$0xff]
        %v395 = vld [vmem:[%s1 + $0x38] sm:$0xff]
        %v396 = vld [vmem:[%s1 + $0x40] sm:$0xff]
        %v397 = vld [vmem:[%s1 + $0x48] sm:$0xff]
        %v398 = vld [vmem:[%s1 + $0x50] sm:$0xff]
        %v399 = vld [vmem:[%s1 + $0x58] sm:$0xff]
        %v400 = vld [vmem:[%s1 + $0x60] sm:$0xff]
        %v401 = vld [vmem:[%s1 + $0x68] sm:$0xff]
        %v402 = vld [vmem:[%s1 + $0x70] sm:$0xff]
        %v403 = vld [vmem:[%s1 + $0x78] sm:$0xff]
        %v404 = vld [vmem:[%s1 + $0x80] sm:$0xff]
        %v405 = vld [vmem:[%s1 + $0x88] sm:$0xff]
        %v406 = vld [vmem:[%s1 + $0x90] sm:$0xff]
        %v407 = vld [vmem:[%s1 + $0x98] sm:$0xff]
        %v408 = vld [vmem:[%s1 + $0xa0] sm:$0xff]
        %v409 = vld [vmem:[%s1 + $0xa8] sm:$0xff]
        %v410 = vld [vmem:[%s1 + $0xb0] sm:$0xff]
        %v411 = vld [vmem:[%s1 + $0xb8] sm:$0xff]
        %s412 = scalar_lea.vmem %s1, 192
        %v413 = vld [vmem:[%s412] sm:$0xff]
        %v414 = vld [vmem:[%s412 + $0x8] sm:$0xff]
        %v415 = vld [vmem:[%s412 + $0x10] sm:$0xff]
        %v416 = vld [vmem:[%s412 + $0x18] sm:$0xff]
        %v417 = vld [vmem:[%s412 + $0x20] sm:$0xff]
        %v418 = vld [vmem:[%s412 + $0x28] sm:$0xff]
        %v419 = vld [vmem:[%s412 + $0x30] sm:$0xff]
        %v420 = vld [vmem:[%s412 + $0x38] sm:$0xff]
        %v421 = vld [vmem:[%s412 + $0x40] sm:$0xff]
        %v422 = vld [vmem:[%s412 + $0x48] sm:$0xff]
        %v423 = vld [vmem:[%s412 + $0x50] sm:$0xff]
        %v424 = vld [vmem:[%s412 + $0x58] sm:$0xff]
        %v425 = vld [vmem:[%s412 + $0x60] sm:$0xff]
        %v426 = vld [vmem:[%s412 + $0x68] sm:$0xff]
        %v427 = vld [vmem:[%s412 + $0x70] sm:$0xff]
        %v428 = vld [vmem:[%s412 + $0x78] sm:$0xff]
        %v429 = vld [vmem:[%s412 + $0x80] sm:$0xff]
        %v430 = vld [vmem:[%s412 + $0x88] sm:$0xff]
        %v431 = vld [vmem:[%s412 + $0x90] sm:$0xff]
        %v432 = vld [vmem:[%s412 + $0x98] sm:$0xff]
        %v433 = vld [vmem:[%s412 + $0xa0] sm:$0xff]
        %v434 = vld [vmem:[%s412 + $0xa8] sm:$0xff]
        %v435 = vld [vmem:[%s412 + $0xb0] sm:$0xff]
        %v436 = vld [vmem:[%s412 + $0xb8] sm:$0xff]
        %vm441 = vcmask 1046528
        %v442 = vrot.slane %v384, 1
        %v443 = vrot.slane %v385, 1
        %v444 = vsel %vm441, %v442, %v443
        %v445 = vrot.slane %v386, 1
        %v446 = vsel %vm441, %v443, %v445
        %v447 = vrot.slane %v387, 1
        %v448 = vsel %vm441, %v445, %v447
        %vm449 = vcmask 785408
        %v450 = vsel %vm449, %v444, 0
        %v452 = vsel %vm449, %v446, 0
        %v454 = vsel %vm449, %v448, 0
        %v456 = vsel %vm449, %v447, 0
        %458 = vmatprep.subr.mxu0 0.0
        %459 = vmatpush1.msra.mxu0 0.0
        %460 = vmatprep.subr.mxu0 0.0
        %461 = vmatpush1.msra.mxu0 0.0
        %462 = vmatprep.subr.mxu0 0.0
        %463 = vmatpush1.msra.mxu0 0.0
        %464 = vmatprep.subr.mxu0 0.0
        %465 = vmatpush1.msra.mxu0 0.0
        %466 = vmatprep.subr.mxu0 %v436
        %467 = vmatpush1.msra.mxu0 %v435
        %468 = vmatprep.subr.mxu0 %v434
        %469 = vmatpush1.msra.mxu0 %v433
        %470 = vmatprep.subr.mxu0 %v432
        %471 = vmatpush1.msra.mxu0 %v431
        %472 = vmatprep.subr.mxu0 %v430
        %473 = vmatpush1.msra.mxu0 %v429
        %474 = vmatprep.subr.mxu0 %v428
        %475 = vmatpush1.msra.mxu0 %v427
        %476 = vmatprep.subr.mxu0 %v426
        %477 = vmatpush1.msra.mxu0 %v425
        %478 = vmatprep.subr.mxu0 %v424
        %479 = vmatpush1.msra.mxu0 %v423
        %480 = vmatprep.subr.mxu0 %v422
        %481 = vmatpush1.msra.mxu0 %v421
        %482 = vmatprep.subr.mxu0 %v420
        %483 = vmatpush1.msra.mxu0 %v419
        %484 = vmatprep.subr.mxu0 %v418
        %485 = vmatpush1.msra.mxu0 %v417
        %486 = vmatprep.subr.mxu0 %v416
        %487 = vmatpush1.msra.mxu0 %v415
        %488 = vmatprep.subr.mxu0 %v414
        %489 = vmatpush1.msra.mxu0 %v413
        %490 = vmatprep.subr.mxu0 0.0
        %491 = vmatpush2.msra.mxu0 0.0
        %492 = vmatprep.subr.mxu0 0.0
        %493 = vmatpush2.msra.mxu0 0.0
        %494 = vmatprep.subr.mxu0 0.0
        %495 = vmatpush2.msra.mxu0 0.0
        %496 = vmatprep.subr.mxu0 0.0
        %497 = vmatpush2.msra.mxu0 0.0
        %498 = vmatprep.subr.mxu0 0.0
        %499 = vmatpush2.msra.mxu0 0.0
        %500 = vmatprep.subr.mxu0 0.0
        %501 = vmatpush2.msra.mxu0 0.0
        %502 = vmatprep.subr.mxu0 0.0
        %503 = vmatpush2.msra.mxu0 0.0
        %504 = vmatprep.subr.mxu0 0.0
        %505 = vmatpush2.msra.mxu0 0.0
        %506 = vmatprep.subr.mxu0 0.0
        %507 = vmatpush2.msra.mxu0 0.0
        %508 = vmatprep.subr.mxu0 0.0
        %509 = vmatpush2.msra.mxu0 0.0
        %510 = vmatprep.subr.mxu0 0.0
        %511 = vmatpush2.msra.mxu0 0.0
        %512 = vmatprep.subr.mxu0 0.0
        %513 = vmatpush2.msra.mxu0 0.0
        %514 = vmatprep.subr.mxu0 0.0
        %515 = vmatpush2.msra.mxu0 0.0
        %516 = vmatprep.subr.mxu0 0.0
        %517 = vmatpush2.msra.mxu0 0.0
        %518 = vmatprep.subr.mxu0 0.0
        %519 = vmatpush2.msra.mxu0 0.0
        %520 = vmatprep.subr.mxu0 0.0
        %521 = vmatpush2.msra.mxu0 0.0
        %522 = vmatprep.mubr.f32.mxu0 0.0
        %523 = vmatmul.mubr.f32.gmra.mxu0 %v450
        %v524 = vpop.f32.mrf.mxu0
        %v525 = vadd.f32 0.0, %v524
        %v526 = vpop.f32.mrf.mxu0
        %v527 = vadd.f32 0.0, %v526
        %528 = vmatprep.mubr.f32.mxu0 0.0
        %529 = vmatmul.mubr.f32.gmra.mxu0 %v452
        %v530 = vpop.f32.mrf.mxu0
        %v531 = vadd.f32 0.0, %v530
        %v532 = vpop.f32.mrf.mxu0
        %v533 = vadd.f32 0.0, %v532
        %534 = vmatprep.mubr.f32.mxu0 0.0
        %535 = vmatmul.mubr.f32.gmra.mxu0 %v454
        %v536 = vpop.f32.mrf.mxu0
        %v537 = vadd.f32 0.0, %v536
        %v538 = vpop.f32.mrf.mxu0
        %v539 = vadd.f32 0.0, %v538
        %540 = vmatprep.mubr.f32.mxu0 0.0
        %541 = vmatmul.mubr.f32.gmra.mxu0 %v456
        %v542 = vpop.f32.mrf.mxu0
        %v543 = vadd.f32 0.0, %v542
        %v544 = vpop.f32.mrf.mxu0
        %v545 = vadd.f32 0.0, %v544
        %546 = vdwg.mxu0
        %v547 = vsel %vm449, %v384, 0
        %v549 = vsel %vm449, %v385, 0
        %v551 = vsel %vm449, %v386, 0
        %v553 = vsel %vm449, %v387, 0
        %555 = vmatprep.subr.mxu0 0.0
        %556 = vmatpush1.msra.mxu0 0.0
        %557 = vmatprep.subr.mxu0 0.0
        %558 = vmatpush1.msra.mxu0 0.0
        %559 = vmatprep.subr.mxu0 0.0
        %560 = vmatpush1.msra.mxu0 0.0
        %561 = vmatprep.subr.mxu0 0.0
        %562 = vmatpush1.msra.mxu0 0.0
        %563 = vmatprep.subr.mxu0 %v411
        %564 = vmatpush1.msra.mxu0 %v410
        %565 = vmatprep.subr.mxu0 %v409
        %566 = vmatpush1.msra.mxu0 %v408
        %567 = vmatprep.subr.mxu0 %v407
        %568 = vmatpush1.msra.mxu0 %v406
        %569 = vmatprep.subr.mxu0 %v405
        %570 = vmatpush1.msra.mxu0 %v404
        %571 = vmatprep.subr.mxu0 %v403
        %572 = vmatpush1.msra.mxu0 %v402
        %573 = vmatprep.subr.mxu0 %v401
        %574 = vmatpush1.msra.mxu0 %v400
        %575 = vmatprep.subr.mxu0 %v399
        %576 = vmatpush1.msra.mxu0 %v398
        %577 = vmatprep.subr.mxu0 %v397
        %578 = vmatpush1.msra.mxu0 %v396
        %579 = vmatprep.subr.mxu0 %v395
        %580 = vmatpush1.msra.mxu0 %v394
        %581 = vmatprep.subr.mxu0 %v393
        %582 = vmatpush1.msra.mxu0 %v392
        %583 = vmatprep.subr.mxu0 %v391
        %584 = vmatpush1.msra.mxu0 %v390
        %585 = vmatprep.subr.mxu0 %v389
        %586 = vmatpush1.msra.mxu0 %v388
        %587 = vmatprep.subr.mxu0 0.0
        %588 = vmatpush2.msra.mxu0 0.0
        %589 = vmatprep.subr.mxu0 0.0
        %590 = vmatpush2.msra.mxu0 0.0
        %591 = vmatprep.subr.mxu0 0.0
        %592 = vmatpush2.msra.mxu0 0.0
        %593 = vmatprep.subr.mxu0 0.0
        %594 = vmatpush2.msra.mxu0 0.0
        %595 = vmatprep.subr.mxu0 0.0
        %596 = vmatpush2.msra.mxu0 0.0
        %597 = vmatprep.subr.mxu0 0.0
        %598 = vmatpush2.msra.mxu0 0.0
        %599 = vmatprep.subr.mxu0 0.0
        %600 = vmatpush2.msra.mxu0 0.0
        %601 = vmatprep.subr.mxu0 0.0
        %602 = vmatpush2.msra.mxu0 0.0
        %603 = vmatprep.subr.mxu0 0.0
        %604 = vmatpush2.msra.mxu0 0.0
        %605 = vmatprep.subr.mxu0 0.0
        %606 = vmatpush2.msra.mxu0 0.0
        %607 = vmatprep.subr.mxu0 0.0
        %608 = vmatpush2.msra.mxu0 0.0
        %609 = vmatprep.subr.mxu0 0.0
        %610 = vmatpush2.msra.mxu0 0.0
        %611 = vmatprep.subr.mxu0 0.0
        %612 = vmatpush2.msra.mxu0 0.0
        %613 = vmatprep.subr.mxu0 0.0
        %614 = vmatpush2.msra.mxu0 0.0
        %615 = vmatprep.subr.mxu0 0.0
        %616 = vmatpush2.msra.mxu0 0.0
        %617 = vmatprep.subr.mxu0 0.0
        %618 = vmatpush2.msra.mxu0 0.0
        %619 = vmatprep.mubr.f32.mxu0 0.0
        %620 = vmatmul.mubr.f32.gmra.mxu0 %v547
        %v621 = vpop.f32.mrf.mxu0
        %v622 = vadd.f32 %v525, %v621
        %v623 = vpop.f32.mrf.mxu0
        %v624 = vadd.f32 %v527, %v623
        %625 = vmatprep.mubr.f32.mxu0 0.0
        %626 = vmatmul.mubr.f32.gmra.mxu0 %v549
        %v627 = vpop.f32.mrf.mxu0
        %v628 = vadd.f32 %v531, %v627
        %v629 = vpop.f32.mrf.mxu0
        %v630 = vadd.f32 %v533, %v629
        %631 = vmatprep.mubr.f32.mxu0 0.0
        %632 = vmatmul.mubr.f32.gmra.mxu0 %v551
        %v633 = vpop.f32.mrf.mxu0
        %v634 = vadd.f32 %v537, %v633
        %v635 = vpop.f32.mrf.mxu0
        %v636 = vadd.f32 %v539, %v635
        %637 = vmatprep.mubr.f32.mxu0 0.0
        %638 = vmatmul.mubr.f32.gmra.mxu0 %v553
        %v639 = vpop.f32.mrf.mxu0
        %v640 = vadd.f32 %v543, %v639
        %v641 = vpop.f32.mrf.mxu0
        %v642 = vadd.f32 %v545, %v641
        %643 = vdwg.mxu0
        %s644 = scalar_lea.vmem %s1, 384
        %v645 = vld [vmem:[%s644] sm:$0xff]
        %v646 = vld [vmem:[%s644 + $0x8] sm:$0xff]
        %v647 = vld [vmem:[%s644 + $0x10] sm:$0xff]
        %v648 = vld [vmem:[%s644 + $0x18] sm:$0xff]
        %v649 = vld [vmem:[%s644 + $0x20] sm:$0xff]
        %v650 = vld [vmem:[%s644 + $0x28] sm:$0xff]
        %v651 = vld [vmem:[%s644 + $0x30] sm:$0xff]
        %v652 = vld [vmem:[%s644 + $0x38] sm:$0xff]
        %v653 = vld [vmem:[%s644 + $0x40] sm:$0xff]
        %v654 = vld [vmem:[%s644 + $0x48] sm:$0xff]
        %v655 = vld [vmem:[%s644 + $0x50] sm:$0xff]
        %v656 = vld [vmem:[%s644 + $0x58] sm:$0xff]
        %v657 = vld [vmem:[%s644 + $0x60] sm:$0xff]
        %v658 = vld [vmem:[%s644 + $0x68] sm:$0xff]
        %v659 = vld [vmem:[%s644 + $0x70] sm:$0xff]
        %v660 = vld [vmem:[%s644 + $0x78] sm:$0xff]
        %v661 = vld [vmem:[%s644 + $0x80] sm:$0xff]
        %v662 = vld [vmem:[%s644 + $0x88] sm:$0xff]
        %v663 = vld [vmem:[%s644 + $0x90] sm:$0xff]
        %v664 = vld [vmem:[%s644 + $0x98] sm:$0xff]
        %v665 = vld [vmem:[%s644 + $0xa0] sm:$0xff]
        %v666 = vld [vmem:[%s644 + $0xa8] sm:$0xff]
        %v667 = vld [vmem:[%s644 + $0xb0] sm:$0xff]
        %v668 = vld [vmem:[%s644 + $0xb8] sm:$0xff]
        %vm669 = vcmask 1045504
        %v670 = vrot.slane %v384, 2
        %v671 = vrot.slane %v385, 2
        %v672 = vsel %vm669, %v670, %v671
        %v673 = vrot.slane %v386, 2
        %v674 = vsel %vm669, %v671, %v673
        %v675 = vrot.slane %v387, 2
        %v676 = vsel %vm669, %v673, %v675
        %v677 = vsel %vm449, %v672, 0
        %v679 = vsel %vm449, %v674, 0
        %v681 = vsel %vm449, %v676, 0
        %v683 = vsel %vm449, %v675, 0
        %685 = vmatprep.subr.mxu0 0.0
        %686 = vmatpush1.msra.mxu0 0.0
        %687 = vmatprep.subr.mxu0 0.0
        %688 = vmatpush1.msra.mxu0 0.0
        %689 = vmatprep.subr.mxu0 0.0
        %690 = vmatpush1.msra.mxu0 0.0
        %691 = vmatprep.subr.mxu0 0.0
        %692 = vmatpush1.msra.mxu0 0.0
        %693 = vmatprep.subr.mxu0 %v668
        %694 = vmatpush1.msra.mxu0 %v667
        %695 = vmatprep.subr.mxu0 %v666
        %696 = vmatpush1.msra.mxu0 %v665
        %697 = vmatprep.subr.mxu0 %v664
        %698 = vmatpush1.msra.mxu0 %v663
        %699 = vmatprep.subr.mxu0 %v662
        %700 = vmatpush1.msra.mxu0 %v661
        %701 = vmatprep.subr.mxu0 %v660
        %702 = vmatpush1.msra.mxu0 %v659
        %703 = vmatprep.subr.mxu0 %v658
        %704 = vmatpush1.msra.mxu0 %v657
        %705 = vmatprep.subr.mxu0 %v656
        %706 = vmatpush1.msra.mxu0 %v655
        %707 = vmatprep.subr.mxu0 %v654
        %708 = vmatpush1.msra.mxu0 %v653
        %709 = vmatprep.subr.mxu0 %v652
        %710 = vmatpush1.msra.mxu0 %v651
        %711 = vmatprep.subr.mxu0 %v650
        %712 = vmatpush1.msra.mxu0 %v649
        %713 = vmatprep.subr.mxu0 %v648
        %714 = vmatpush1.msra.mxu0 %v647
        %715 = vmatprep.subr.mxu0 %v646
        %716 = vmatpush1.msra.mxu0 %v645
        %717 = vmatprep.subr.mxu0 0.0
        %718 = vmatpush2.msra.mxu0 0.0
        %719 = vmatprep.subr.mxu0 0.0
        %720 = vmatpush2.msra.mxu0 0.0
        %721 = vmatprep.subr.mxu0 0.0
        %722 = vmatpush2.msra.mxu0 0.0
        %723 = vmatprep.subr.mxu0 0.0
        %724 = vmatpush2.msra.mxu0 0.0
        %725 = vmatprep.subr.mxu0 0.0
        %726 = vmatpush2.msra.mxu0 0.0
        %727 = vmatprep.subr.mxu0 0.0
        %728 = vmatpush2.msra.mxu0 0.0
        %729 = vmatprep.subr.mxu0 0.0
        %730 = vmatpush2.msra.mxu0 0.0
        %731 = vmatprep.subr.mxu0 0.0
        %732 = vmatpush2.msra.mxu0 0.0
        %733 = vmatprep.subr.mxu0 0.0
        %734 = vmatpush2.msra.mxu0 0.0
        %735 = vmatprep.subr.mxu0 0.0
        %736 = vmatpush2.msra.mxu0 0.0
        %737 = vmatprep.subr.mxu0 0.0
        %738 = vmatpush2.msra.mxu0 0.0
        %739 = vmatprep.subr.mxu0 0.0
        %740 = vmatpush2.msra.mxu0 0.0
        %741 = vmatprep.subr.mxu0 0.0
        %742 = vmatpush2.msra.mxu0 0.0
        %743 = vmatprep.subr.mxu0 0.0
        %744 = vmatpush2.msra.mxu0 0.0
        %745 = vmatprep.subr.mxu0 0.0
        %746 = vmatpush2.msra.mxu0 0.0
        %747 = vmatprep.subr.mxu0 0.0
        %748 = vmatpush2.msra.mxu0 0.0
        %749 = vmatprep.mubr.f32.mxu0 0.0
        %750 = vmatmul.mubr.f32.gmra.mxu0 %v677
        %v751 = vpop.f32.mrf.mxu0
        %v752 = vadd.f32 0.0, %v751
        %v753 = vpop.f32.mrf.mxu0
        %v754 = vadd.f32 0.0, %v753
        %755 = vmatprep.mubr.f32.mxu0 0.0
        %756 = vmatmul.mubr.f32.gmra.mxu0 %v679
        %v757 = vpop.f32.mrf.mxu0
        %v758 = vadd.f32 0.0, %v757
        %v759 = vpop.f32.mrf.mxu0
        %v760 = vadd.f32 0.0, %v759
        %761 = vmatprep.mubr.f32.mxu0 0.0
        %762 = vmatmul.mubr.f32.gmra.mxu0 %v681
        %v763 = vpop.f32.mrf.mxu0
        %v764 = vadd.f32 0.0, %v763
        %v765 = vpop.f32.mrf.mxu0
        %v766 = vadd.f32 0.0, %v765
        %767 = vmatprep.mubr.f32.mxu0 0.0
        %768 = vmatmul.mubr.f32.gmra.mxu0 %v683
        %v769 = vpop.f32.mrf.mxu0
        %v770 = vadd.f32 0.0, %v769
        %v771 = vpop.f32.mrf.mxu0
        %v772 = vadd.f32 0.0, %v771
        %773 = vdwg.mxu0
        %v774 = vadd.f32 %v622, %v752
        %v775 = vadd.f32 %v624, %v754
        %v776 = vadd.f32 %v628, %v758
        %v777 = vadd.f32 %v630, %v760
        %v778 = vadd.f32 %v634, %v764
        %v779 = vadd.f32 %v636, %v766
        %v780 = vadd.f32 %v640, %v770
        %v781 = vadd.f32 %v642, %v772
        %s782 = scalar_lea.vmem %s1, 576
        %v783 = vld [vmem:[%s782] sm:$0xff]
        %v784 = vld [vmem:[%s782 + $0x8] sm:$0xff]
        %v785 = vld [vmem:[%s782 + $0x10] sm:$0xff]
        %v786 = vld [vmem:[%s782 + $0x18] sm:$0xff]
        %v787 = vld [vmem:[%s782 + $0x20] sm:$0xff]
        %v788 = vld [vmem:[%s782 + $0x28] sm:$0xff]
        %v789 = vld [vmem:[%s782 + $0x30] sm:$0xff]
        %v790 = vld [vmem:[%s782 + $0x38] sm:$0xff]
        %v791 = vld [vmem:[%s782 + $0x40] sm:$0xff]
        %v792 = vld [vmem:[%s782 + $0x48] sm:$0xff]
        %v793 = vld [vmem:[%s782 + $0x50] sm:$0xff]
        %v794 = vld [vmem:[%s782 + $0x58] sm:$0xff]
        %v795 = vld [vmem:[%s782 + $0x60] sm:$0xff]
        %v796 = vld [vmem:[%s782 + $0x68] sm:$0xff]
        %v797 = vld [vmem:[%s782 + $0x70] sm:$0xff]
        %v798 = vld [vmem:[%s782 + $0x78] sm:$0xff]
        %v799 = vld [vmem:[%s782 + $0x80] sm:$0xff]
        %v800 = vld [vmem:[%s782 + $0x88] sm:$0xff]
        %v801 = vld [vmem:[%s782 + $0x90] sm:$0xff]
        %v802 = vld [vmem:[%s782 + $0x98] sm:$0xff]
        %v803 = vld [vmem:[%s782 + $0xa0] sm:$0xff]
        %v804 = vld [vmem:[%s782 + $0xa8] sm:$0xff]
        %v805 = vld [vmem:[%s782 + $0xb0] sm:$0xff]
        %v806 = vld [vmem:[%s782 + $0xb8] sm:$0xff]
        %vm807 = vcmask 1044480
        %v808 = vrot.slane %v384, 3
        %v809 = vrot.slane %v385, 3
        %v810 = vsel %vm807, %v808, %v809
        %v811 = vrot.slane %v386, 3
        %v812 = vsel %vm807, %v809, %v811
        %v813 = vrot.slane %v387, 3
        %v814 = vsel %vm807, %v811, %v813
        %v815 = vsel %vm449, %v810, 0
        %v817 = vsel %vm449, %v812, 0
        %v819 = vsel %vm449, %v814, 0
        %v821 = vsel %vm449, %v813, 0
        %823 = vmatprep.subr.mxu0 0.0
        %824 = vmatpush1.msra.mxu0 0.0
        %825 = vmatprep.subr.mxu0 0.0
        %826 = vmatpush1.msra.mxu0 0.0
        %827 = vmatprep.subr.mxu0 0.0
        %828 = vmatpush1.msra.mxu0 0.0
        %829 = vmatprep.subr.mxu0 0.0
        %830 = vmatpush1.msra.mxu0 0.0
        %831 = vmatprep.subr.mxu0 %v806
        %832 = vmatpush1.msra.mxu0 %v805
        %833 = vmatprep.subr.mxu0 %v804
        %834 = vmatpush1.msra.mxu0 %v803
        %835 = vmatprep.subr.mxu0 %v802
        %836 = vmatpush1.msra.mxu0 %v801
        %837 = vmatprep.subr.mxu0 %v800
        %838 = vmatpush1.msra.mxu0 %v799
        %839 = vmatprep.subr.mxu0 %v798
        %840 = vmatpush1.msra.mxu0 %v797
        %841 = vmatprep.subr.mxu0 %v796
        %842 = vmatpush1.msra.mxu0 %v795
        %843 = vmatprep.subr.mxu0 %v794
        %844 = vmatpush1.msra.mxu0 %v793
        %845 = vmatprep.subr.mxu0 %v792
        %846 = vmatpush1.msra.mxu0 %v791
        %847 = vmatprep.subr.mxu0 %v790
        %848 = vmatpush1.msra.mxu0 %v789
        %849 = vmatprep.subr.mxu0 %v788
        %850 = vmatpush1.msra.mxu0 %v787
        %851 = vmatprep.subr.mxu0 %v786
        %852 = vmatpush1.msra.mxu0 %v785
        %853 = vmatprep.subr.mxu0 %v784
        %854 = vmatpush1.msra.mxu0 %v783
        %855 = vmatprep.subr.mxu0 0.0
        %856 = vmatpush2.msra.mxu0 0.0
        %857 = vmatprep.subr.mxu0 0.0
        %858 = vmatpush2.msra.mxu0 0.0
        %859 = vmatprep.subr.mxu0 0.0
        %860 = vmatpush2.msra.mxu0 0.0
        %861 = vmatprep.subr.mxu0 0.0
        %862 = vmatpush2.msra.mxu0 0.0
        %863 = vmatprep.subr.mxu0 0.0
        %864 = vmatpush2.msra.mxu0 0.0
        %865 = vmatprep.subr.mxu0 0.0
        %866 = vmatpush2.msra.mxu0 0.0
        %867 = vmatprep.subr.mxu0 0.0
        %868 = vmatpush2.msra.mxu0 0.0
        %869 = vmatprep.subr.mxu0 0.0
        %870 = vmatpush2.msra.mxu0 0.0
        %871 = vmatprep.subr.mxu0 0.0
        %872 = vmatpush2.msra.mxu0 0.0
        %873 = vmatprep.subr.mxu0 0.0
        %874 = vmatpush2.msra.mxu0 0.0
        %875 = vmatprep.subr.mxu0 0.0
        %876 = vmatpush2.msra.mxu0 0.0
        %877 = vmatprep.subr.mxu0 0.0
        %878 = vmatpush2.msra.mxu0 0.0
        %879 = vmatprep.subr.mxu0 0.0
        %880 = vmatpush2.msra.mxu0 0.0
        %881 = vmatprep.subr.mxu0 0.0
        %882 = vmatpush2.msra.mxu0 0.0
        %883 = vmatprep.subr.mxu0 0.0
        %884 = vmatpush2.msra.mxu0 0.0
        %885 = vmatprep.subr.mxu0 0.0
        %886 = vmatpush2.msra.mxu0 0.0
        %887 = vmatprep.mubr.f32.mxu0 0.0
        %888 = vmatmul.mubr.f32.gmra.mxu0 %v815
        %v889 = vpop.f32.mrf.mxu0
        %v890 = vadd.f32 0.0, %v889
        %v891 = vpop.f32.mrf.mxu0
        %v892 = vadd.f32 0.0, %v891
        %893 = vmatprep.mubr.f32.mxu0 0.0
        %894 = vmatmul.mubr.f32.gmra.mxu0 %v817
        %v895 = vpop.f32.mrf.mxu0
        %v896 = vadd.f32 0.0, %v895
        %v897 = vpop.f32.mrf.mxu0
        %v898 = vadd.f32 0.0, %v897
        %899 = vmatprep.mubr.f32.mxu0 0.0
        %900 = vmatmul.mubr.f32.gmra.mxu0 %v819
        %v901 = vpop.f32.mrf.mxu0
        %v902 = vadd.f32 0.0, %v901
        %v903 = vpop.f32.mrf.mxu0
        %v904 = vadd.f32 0.0, %v903
        %905 = vmatprep.mubr.f32.mxu0 0.0
        %906 = vmatmul.mubr.f32.gmra.mxu0 %v821
        %v907 = vpop.f32.mrf.mxu0
        %v908 = vadd.f32 0.0, %v907
        %v909 = vpop.f32.mrf.mxu0
        %v910 = vadd.f32 0.0, %v909
        %911 = vdwg.mxu0
        %v912 = vadd.f32 %v774, %v890
        %v913 = vadd.f32 %v775, %v892
        %v914 = vadd.f32 %v776, %v896
        %v915 = vadd.f32 %v777, %v898
        %v916 = vadd.f32 %v778, %v902
        %v917 = vadd.f32 %v779, %v904
        %v918 = vadd.f32 %v780, %v908
        %v919 = vadd.f32 %v781, %v910
        %s920 = scalar_lea.vmem %s1, 768
        %v921 = vld [vmem:[%s920] sm:$0xff]
        %v922 = vld [vmem:[%s920 + $0x8] sm:$0xff]
        %v923 = vld [vmem:[%s920 + $0x10] sm:$0xff]
        %v924 = vld [vmem:[%s920 + $0x18] sm:$0xff]
        %v925 = vld [vmem:[%s920 + $0x20] sm:$0xff]
        %v926 = vld [vmem:[%s920 + $0x28] sm:$0xff]
        %v927 = vld [vmem:[%s920 + $0x30] sm:$0xff]
        %v928 = vld [vmem:[%s920 + $0x38] sm:$0xff]
        %v929 = vld [vmem:[%s920 + $0x40] sm:$0xff]
        %v930 = vld [vmem:[%s920 + $0x48] sm:$0xff]
        %v931 = vld [vmem:[%s920 + $0x50] sm:$0xff]
        %v932 = vld [vmem:[%s920 + $0x58] sm:$0xff]
        %v933 = vld [vmem:[%s920 + $0x60] sm:$0xff]
        %v934 = vld [vmem:[%s920 + $0x68] sm:$0xff]
        %v935 = vld [vmem:[%s920 + $0x70] sm:$0xff]
        %v936 = vld [vmem:[%s920 + $0x78] sm:$0xff]
        %v937 = vld [vmem:[%s920 + $0x80] sm:$0xff]
        %v938 = vld [vmem:[%s920 + $0x88] sm:$0xff]
        %v939 = vld [vmem:[%s920 + $0x90] sm:$0xff]
        %v940 = vld [vmem:[%s920 + $0x98] sm:$0xff]
        %v941 = vld [vmem:[%s920 + $0xa0] sm:$0xff]
        %v942 = vld [vmem:[%s920 + $0xa8] sm:$0xff]
        %v943 = vld [vmem:[%s920 + $0xb0] sm:$0xff]
        %v944 = vld [vmem:[%s920 + $0xb8] sm:$0xff]
        %vm945 = vcmask 1043456
        %v946 = vrot.slane %v384, 4
        %v947 = vrot.slane %v385, 4
        %v948 = vsel %vm945, %v946, %v947
        %v949 = vrot.slane %v386, 4
        %v950 = vsel %vm945, %v947, %v949
        %v951 = vrot.slane %v387, 4
        %v952 = vsel %vm945, %v949, %v951
        %v953 = vsel %vm449, %v948, 0
        %v955 = vsel %vm449, %v950, 0
        %v957 = vsel %vm449, %v952, 0
        %v959 = vsel %vm449, %v951, 0
        %961 = vmatprep.subr.mxu0 0.0
        %962 = vmatpush1.msra.mxu0 0.0
        %963 = vmatprep.subr.mxu0 0.0
        %964 = vmatpush1.msra.mxu0 0.0
        %965 = vmatprep.subr.mxu0 0.0
        %966 = vmatpush1.msra.mxu0 0.0
        %967 = vmatprep.subr.mxu0 0.0
        %968 = vmatpush1.msra.mxu0 0.0
        %969 = vmatprep.subr.mxu0 %v944
        %970 = vmatpush1.msra.mxu0 %v943
        %971 = vmatprep.subr.mxu0 %v942
        %972 = vmatpush1.msra.mxu0 %v941
        %973 = vmatprep.subr.mxu0 %v940
        %974 = vmatpush1.msra.mxu0 %v939
        %975 = vmatprep.subr.mxu0 %v938
        %976 = vmatpush1.msra.mxu0 %v937
        %977 = vmatprep.subr.mxu0 %v936
        %978 = vmatpush1.msra.mxu0 %v935
        %979 = vmatprep.subr.mxu0 %v934
        %980 = vmatpush1.msra.mxu0 %v933
        %981 = vmatprep.subr.mxu0 %v932
        %982 = vmatpush1.msra.mxu0 %v931
        %983 = vmatprep.subr.mxu0 %v930
        %984 = vmatpush1.msra.mxu0 %v929
        %985 = vmatprep.subr.mxu0 %v928
        %986 = vmatpush1.msra.mxu0 %v927
        %987 = vmatprep.subr.mxu0 %v926
        %988 = vmatpush1.msra.mxu0 %v925
        %989 = vmatprep.subr.mxu0 %v924
        %990 = vmatpush1.msra.mxu0 %v923
        %991 = vmatprep.subr.mxu0 %v922
        %992 = vmatpush1.msra.mxu0 %v921
        %993 = vmatprep.subr.mxu0 0.0
        %994 = vmatpush2.msra.mxu0 0.0
        %995 = vmatprep.subr.mxu0 0.0
        %996 = vmatpush2.msra.mxu0 0.0
        %997 = vmatprep.subr.mxu0 0.0
        %998 = vmatpush2.msra.mxu0 0.0
        %999 = vmatprep.subr.mxu0 0.0
        %1000 = vmatpush2.msra.mxu0 0.0
        %1001 = vmatprep.subr.mxu0 0.0
        %1002 = vmatpush2.msra.mxu0 0.0
        %1003 = vmatprep.subr.mxu0 0.0
        %1004 = vmatpush2.msra.mxu0 0.0
        %1005 = vmatprep.subr.mxu0 0.0
        %1006 = vmatpush2.msra.mxu0 0.0
        %1007 = vmatprep.subr.mxu0 0.0
        %1008 = vmatpush2.msra.mxu0 0.0
        %1009 = vmatprep.subr.mxu0 0.0
        %1010 = vmatpush2.msra.mxu0 0.0
        %1011 = vmatprep.subr.mxu0 0.0
        %1012 = vmatpush2.msra.mxu0 0.0
        %1013 = vmatprep.subr.mxu0 0.0
        %1014 = vmatpush2.msra.mxu0 0.0
        %1015 = vmatprep.subr.mxu0 0.0
        %1016 = vmatpush2.msra.mxu0 0.0
        %1017 = vmatprep.subr.mxu0 0.0
        %1018 = vmatpush2.msra.mxu0 0.0
        %1019 = vmatprep.subr.mxu0 0.0
        %1020 = vmatpush2.msra.mxu0 0.0
        %1021 = vmatprep.subr.mxu0 0.0
        %1022 = vmatpush2.msra.mxu0 0.0
        %1023 = vmatprep.subr.mxu0 0.0
        %1024 = vmatpush2.msra.mxu0 0.0
        %1025 = vmatprep.mubr.f32.mxu0 0.0
        %1026 = vmatmul.mubr.f32.gmra.mxu0 %v953
        %v1027 = vpop.f32.mrf.mxu0
        %v1028 = vadd.f32 0.0, %v1027
        %v1029 = vpop.f32.mrf.mxu0
        %v1030 = vadd.f32 0.0, %v1029
        %1031 = vmatprep.mubr.f32.mxu0 0.0
        %1032 = vmatmul.mubr.f32.gmra.mxu0 %v955
        %v1033 = vpop.f32.mrf.mxu0
        %v1034 = vadd.f32 0.0, %v1033
        %v1035 = vpop.f32.mrf.mxu0
        %v1036 = vadd.f32 0.0, %v1035
        %1037 = vmatprep.mubr.f32.mxu0 0.0
        %1038 = vmatmul.mubr.f32.gmra.mxu0 %v957
        %v1039 = vpop.f32.mrf.mxu0
        %v1040 = vadd.f32 0.0, %v1039
        %v1041 = vpop.f32.mrf.mxu0
        %v1042 = vadd.f32 0.0, %v1041
        %1043 = vmatprep.mubr.f32.mxu0 0.0
        %1044 = vmatmul.mubr.f32.gmra.mxu0 %v959
        %v1045 = vpop.f32.mrf.mxu0
        %v1046 = vadd.f32 0.0, %v1045
        %v1047 = vpop.f32.mrf.mxu0
        %v1048 = vadd.f32 0.0, %v1047
        %1049 = vdwg.mxu0
        %v1050 = vadd.f32 %v912, %v1028
        %v1051 = vadd.f32 %v913, %v1030
        %v1052 = vadd.f32 %v914, %v1034
        %v1053 = vadd.f32 %v915, %v1036
        %v1054 = vadd.f32 %v916, %v1040
        %v1055 = vadd.f32 %v917, %v1042
        %v1056 = vadd.f32 %v918, %v1046
        %v1057 = vadd.f32 %v919, %v1048
        %1066 = vrot.lane.b32.xlu0 %v1050, 44
        %v1067 = vpop.permute.xlu0 %1066
        %1068 = vrot.lane.b32.xlu0 %v1051, 44
        %v1069 = vpop.permute.xlu0 %1068
        %1070 = vrot.lane.b32.xlu0 %v1052, 44
        %v1071 = vpop.permute.xlu0 %1070
        %1072 = vrot.lane.b32.xlu0 %v1053, 44
        %v1073 = vpop.permute.xlu0 %1072
        %1074 = vrot.lane.b32.xlu0 %v1054, 44
        %v1075 = vpop.permute.xlu0 %1074
        %1076 = vrot.lane.b32.xlu0 %v1055, 44
        %v1077 = vpop.permute.xlu0 %1076
        %1078 = vrot.lane.b32.xlu0 %v1056, 44
        %v1079 = vpop.permute.xlu0 %1078
        %1080 = vrot.lane.b32.xlu0 %v1057, 44
        %v1081 = vpop.permute.xlu0 %1080
        %vm1082 = vcmask 359424
        %v1083 = vsel %vm1082, %v1067, %v1069
        %v1084 = vsel %vm1082, %v1071, %v1073
        %v1085 = vsel %vm1082, %v1075, %v1077
        %v1086 = vsel %vm1082, %v1079, %v1081
        %v1091 = vmax.f32 %v1050, %v1083
        %v1092 = vmax.f32 %v1052, %v1084
        %v1093 = vmax.f32 %v1054, %v1085
        %v1094 = vmax.f32 %v1056, %v1086
        %v1095 = vld [vmem:[%s2] sm:$0x1]
        %v1097 = vrot.slane %v1091, 1
        %v1099 = vmax.f32 %v1091, %v1097
        %v1100 = vadd.f32 %v1099, %v1095
        %v1101 = vmax.f32 %v1100, 0.0
        %vm1102 = vcmask 679936
        %1103 = vst.msk [vmem:[#allocation2] sm:$0x1] %vm1102, %v1101
        %v1105 = vlaneseq
        %v1106 = vshrl.u32 %v1105, 7
        %v1107 = vsub.s32 0, %v1106
        %v1108 = vrot.slane %v1095, %v1107
        %v1110 = vadd.f32 %v1099, %v1108
        %v1111 = vmax.f32 %v1110, 0.0
        %vm1112 = vcmask 681986
        %1113 = vst.msk [vmem:[#allocation2 - $0x1] sm:$0x4] %vm1112, %v1111
        %vm1114 = vcmask 684036
        %1115 = vst.msk [vmem:[#allocation2 - $0x2] sm:$0x10] %vm1114, %v1111
        %vm1116 = vcmask 686086
        %1117 = vst.msk [vmem:[#allocation2 - $0x3] sm:$0x40] %vm1116, %v1111
        %v1119 = vrot.slane %v1092, 1
        %v1121 = vmax.f32 %v1092, %v1119
        %v1122 = vadd.f32 %v1121, %v1095
        %v1123 = vmax.f32 %v1122, 0.0
        %1124 = vst.msk [vmem:[#allocation2 + $0x4] sm:$0x1] %vm1102, %v1123
        %v1125 = vadd.f32 %v1121, %v1108
        %v1126 = vmax.f32 %v1125, 0.0
        %1127 = vst.msk [vmem:[#allocation2 + $0x3] sm:$0x4] %vm1112, %v1126
        %1128 = vst.msk [vmem:[#allocation2 + $0x2] sm:$0x10] %vm1114, %v1126
        %1129 = vst.msk [vmem:[#allocation2 + $0x1] sm:$0x40] %vm1116, %v1126
        %v1131 = vrot.slane %v1093, 1
        %v1133 = vmax.f32 %v1093, %v1131
        %v1134 = vadd.f32 %v1133, %v1095
        %v1135 = vmax.f32 %v1134, 0.0
        %1136 = vst.msk [vmem:[#allocation2 + $0x8] sm:$0x1] %vm1102, %v1135
        %v1137 = vadd.f32 %v1133, %v1108
        %v1138 = vmax.f32 %v1137, 0.0
        %1139 = vst.msk [vmem:[#allocation2 + $0x7] sm:$0x4] %vm1112, %v1138
        %1140 = vst.msk [vmem:[#allocation2 + $0x6] sm:$0x10] %vm1114, %v1138
        %1141 = vst.msk [vmem:[#allocation2 + $0x5] sm:$0x40] %vm1116, %v1138
        %v1143 = vrot.slane %v1094, 1
        %v1145 = vmax.f32 %v1094, %v1143
        %v1146 = vadd.f32 %v1145, %v1095
        %v1147 = vmax.f32 %v1146, 0.0
        %1148 = vst.msk [vmem:[#allocation2 + $0xc] sm:$0x1] %vm1102, %v1147
        %v1149 = vadd.f32 %v1145, %v1108
        %v1150 = vmax.f32 %v1149, 0.0
        %1151 = vst.msk [vmem:[#allocation2 + $0xb] sm:$0x4] %vm1112, %v1150
        %v1152 = vld [vmem:[#allocation2] sm:$0xff]
        %v1153 = vld [vmem:[#allocation2 + $0x8] sm:$0x3]
        %v1154 = vld [vmem:[%s3] sm:$0xff]
        %v1155 = vld [vmem:[%s3 + $0x8] sm:$0xff]
        %v1156 = vld [vmem:[%s3 + $0x10] sm:$0xff]
        %v1157 = vld [vmem:[%s3 + $0x18] sm:$0xff]
        %v1158 = vld [vmem:[%s3 + $0x20] sm:$0xff]
        %v1159 = vld [vmem:[%s3 + $0x28] sm:$0xff]
        %v1160 = vld [vmem:[%s3 + $0x30] sm:$0xff]
        %v1161 = vld [vmem:[%s3 + $0x38] sm:$0xff]
        %v1162 = vld [vmem:[%s3 + $0x40] sm:$0xff]
        %v1163 = vld [vmem:[%s3 + $0x48] sm:$0xff]
        %v1164 = vld [vmem:[%s3 + $0x50] sm:$0xff]
        %v1165 = vld [vmem:[%s3 + $0x58] sm:$0xff]
        %v1166 = vld [vmem:[%s3 + $0x60] sm:$0xff]
        %v1167 = vld [vmem:[%s3 + $0x68] sm:$0xff]
        %v1168 = vld [vmem:[%s3 + $0x70] sm:$0xff]
        %v1169 = vld [vmem:[%s3 + $0x78] sm:$0xff]
        %v1170 = vld [vmem:[%s3 + $0x80] sm:$0xff]
        %v1171 = vld [vmem:[%s3 + $0x88] sm:$0xff]
        %v1172 = vld [vmem:[%s3 + $0x90] sm:$0xff]
        %v1173 = vld [vmem:[%s3 + $0x98] sm:$0xff]
        %v1174 = vld [vmem:[%s3 + $0xa0] sm:$0xf]
        %v1175 = vld [vmem:[%s3 + $0xa8] sm:$0xf]
        %v1176 = vld [vmem:[#allocation2 + $0x1] sm:$0xff]
        %v1177 = vld [vmem:[#allocation2 + $0x9] sm:$0x3]
        %s1178 = scalar_lea.vmem %s3, 176
        %v1179 = vld [vmem:[%s1178] sm:$0xff]
        %v1180 = vld [vmem:[%s1178 + $0x8] sm:$0xff]
        %v1181 = vld [vmem:[%s1178 + $0x10] sm:$0xff]
        %v1182 = vld [vmem:[%s1178 + $0x18] sm:$0xff]
        %v1183 = vld [vmem:[%s1178 + $0x20] sm:$0xff]
        %v1184 = vld [vmem:[%s1178 + $0x28] sm:$0xff]
        %v1185 = vld [vmem:[%s1178 + $0x30] sm:$0xff]
        %v1186 = vld [vmem:[%s1178 + $0x38] sm:$0xff]
        %v1187 = vld [vmem:[%s1178 + $0x40] sm:$0xff]
        %v1188 = vld [vmem:[%s1178 + $0x48] sm:$0xff]
        %v1189 = vld [vmem:[%s1178 + $0x50] sm:$0xff]
        %v1190 = vld [vmem:[%s1178 + $0x58] sm:$0xff]
        %v1191 = vld [vmem:[%s1178 + $0x60] sm:$0xff]
        %v1192 = vld [vmem:[%s1178 + $0x68] sm:$0xff]
        %v1193 = vld [vmem:[%s1178 + $0x70] sm:$0xff]
        %v1194 = vld [vmem:[%s1178 + $0x78] sm:$0xff]
        %v1195 = vld [vmem:[%s1178 + $0x80] sm:$0xff]
        %v1196 = vld [vmem:[%s1178 + $0x88] sm:$0xff]
        %v1197 = vld [vmem:[%s1178 + $0x90] sm:$0xff]
        %v1198 = vld [vmem:[%s1178 + $0x98] sm:$0xff]
        %v1199 = vld [vmem:[%s1178 + $0xa0] sm:$0xf]
        %v1200 = vld [vmem:[%s1178 + $0xa8] sm:$0xf]
        %vm1201 = vcmask 687104
        %v1203 = vsel %vm1201, %v1176, 0
        %v1206 = vsel %vm1201, %v1177, 0
        %v1209 = vsel %vm945, %v1199, 0
        %v1212 = vsel %vm945, %v1200, 0
        %1214 = vmatprep.subr.mxu0 0.0
        %1215 = vmatpush1.msra.mxu0 0.0
        %1216 = vmatprep.subr.mxu0 0.0
        %1217 = vmatpush1.msra.mxu0 0.0
        %1218 = vmatprep.subr.mxu0 0.0
        %1219 = vmatpush1.msra.mxu0 0.0
        %1220 = vmatprep.subr.mxu0 0.0
        %1221 = vmatpush1.msra.mxu0 0.0
        %1222 = vmatprep.subr.mxu0 0.0
        %1223 = vmatpush1.msra.mxu0 0.0
        %1224 = vmatprep.subr.mxu0 %v1212
        %1225 = vmatpush1.msra.mxu0 %v1209
        %1226 = vmatprep.subr.mxu0 %v1198
        %1227 = vmatpush1.msra.mxu0 %v1197
        %1228 = vmatprep.subr.mxu0 %v1196
        %1229 = vmatpush1.msra.mxu0 %v1195
        %1230 = vmatprep.subr.mxu0 %v1194
        %1231 = vmatpush1.msra.mxu0 %v1193
        %1232 = vmatprep.subr.mxu0 %v1192
        %1233 = vmatpush1.msra.mxu0 %v1191
        %1234 = vmatprep.subr.mxu0 %v1190
        %1235 = vmatpush1.msra.mxu0 %v1189
        %1236 = vmatprep.subr.mxu0 %v1188
        %1237 = vmatpush1.msra.mxu0 %v1187
        %1238 = vmatprep.subr.mxu0 %v1186
        %1239 = vmatpush1.msra.mxu0 %v1185
        %1240 = vmatprep.subr.mxu0 %v1184
        %1241 = vmatpush1.msra.mxu0 %v1183
        %1242 = vmatprep.subr.mxu0 %v1182
        %1243 = vmatpush1.msra.mxu0 %v1181
        %1244 = vmatprep.subr.mxu0 %v1180
        %1245 = vmatpush1.msra.mxu0 %v1179
        %1246 = vmatprep.subr.mxu0 0.0
        %1247 = vmatpush2.msra.mxu0 0.0
        %1248 = vmatprep.subr.mxu0 0.0
        %1249 = vmatpush2.msra.mxu0 0.0
        %1250 = vmatprep.subr.mxu0 0.0
        %1251 = vmatpush2.msra.mxu0 0.0
        %1252 = vmatprep.subr.mxu0 0.0
        %1253 = vmatpush2.msra.mxu0 0.0
        %1254 = vmatprep.subr.mxu0 0.0
        %1255 = vmatpush2.msra.mxu0 0.0
        %1256 = vmatprep.subr.mxu0 0.0
        %1257 = vmatpush2.msra.mxu0 0.0
        %1258 = vmatprep.subr.mxu0 0.0
        %1259 = vmatpush2.msra.mxu0 0.0
        %1260 = vmatprep.subr.mxu0 0.0
        %1261 = vmatpush2.msra.mxu0 0.0
        %1262 = vmatprep.subr.mxu0 0.0
        %1263 = vmatpush2.msra.mxu0 0.0
        %1264 = vmatprep.subr.mxu0 0.0
        %1265 = vmatpush2.msra.mxu0 0.0
        %1266 = vmatprep.subr.mxu0 0.0
        %1267 = vmatpush2.msra.mxu0 0.0
        %1268 = vmatprep.subr.mxu0 0.0
        %1269 = vmatpush2.msra.mxu0 0.0
        %1270 = vmatprep.subr.mxu0 0.0
        %1271 = vmatpush2.msra.mxu0 0.0
        %1272 = vmatprep.subr.mxu0 0.0
        %1273 = vmatpush2.msra.mxu0 0.0
        %1274 = vmatprep.subr.mxu0 0.0
        %1275 = vmatpush2.msra.mxu0 0.0
        %1276 = vmatprep.subr.mxu0 0.0
        %1277 = vmatpush2.msra.mxu0 0.0
        %1278 = vmatprep.mubr.f32.mxu0 0.0
        %1279 = vmatmul.mubr.f32.gmra.mxu0 %v1203
        %v1280 = vpop.f32.mrf.mxu0
        %v1281 = vadd.f32 0.0, %v1280
        %v1282 = vpop.f32.mrf.mxu0
        %v1283 = vadd.f32 0.0, %v1282
        %1284 = vmatprep.mubr.f32.mxu0 0.0
        %1285 = vmatmul.mubr.f32.gmra.mxu0 %v1206
        %v1286 = vpop.f32.mrf.mxu0
        %v1287 = vadd.f32 0.0, %v1286
        %v1288 = vpop.f32.mrf.mxu0
        %v1289 = vadd.f32 0.0, %v1288
        %1290 = vdwg.mxu0
        %v1292 = vsel %vm1201, %v1152, 0
        %v1295 = vsel %vm1201, %v1153, 0
        %v1298 = vsel %vm945, %v1174, 0
        %v1301 = vsel %vm945, %v1175, 0
        %1303 = vmatprep.subr.mxu0 0.0
        %1304 = vmatpush1.msra.mxu0 0.0
        %1305 = vmatprep.subr.mxu0 0.0
        %1306 = vmatpush1.msra.mxu0 0.0
        %1307 = vmatprep.subr.mxu0 0.0
        %1308 = vmatpush1.msra.mxu0 0.0
        %1309 = vmatprep.subr.mxu0 0.0
        %1310 = vmatpush1.msra.mxu0 0.0
        %1311 = vmatprep.subr.mxu0 0.0
        %1312 = vmatpush1.msra.mxu0 0.0
        %1313 = vmatprep.subr.mxu0 %v1301
        %1314 = vmatpush1.msra.mxu0 %v1298
        %1315 = vmatprep.subr.mxu0 %v1173
        %1316 = vmatpush1.msra.mxu0 %v1172
        %1317 = vmatprep.subr.mxu0 %v1171
        %1318 = vmatpush1.msra.mxu0 %v1170
        %1319 = vmatprep.subr.mxu0 %v1169
        %1320 = vmatpush1.msra.mxu0 %v1168
        %1321 = vmatprep.subr.mxu0 %v1167
        %1322 = vmatpush1.msra.mxu0 %v1166
        %1323 = vmatprep.subr.mxu0 %v1165
        %1324 = vmatpush1.msra.mxu0 %v1164
        %1325 = vmatprep.subr.mxu0 %v1163
        %1326 = vmatpush1.msra.mxu0 %v1162
        %1327 = vmatprep.subr.mxu0 %v1161
        %1328 = vmatpush1.msra.mxu0 %v1160
        %1329 = vmatprep.subr.mxu0 %v1159
        %1330 = vmatpush1.msra.mxu0 %v1158
        %1331 = vmatprep.subr.mxu0 %v1157
        %1332 = vmatpush1.msra.mxu0 %v1156
        %1333 = vmatprep.subr.mxu0 %v1155
        %1334 = vmatpush1.msra.mxu0 %v1154
        %1335 = vmatprep.subr.mxu0 0.0
        %1336 = vmatpush2.msra.mxu0 0.0
        %1337 = vmatprep.subr.mxu0 0.0
        %1338 = vmatpush2.msra.mxu0 0.0
        %1339 = vmatprep.subr.mxu0 0.0
        %1340 = vmatpush2.msra.mxu0 0.0
        %1341 = vmatprep.subr.mxu0 0.0
        %1342 = vmatpush2.msra.mxu0 0.0
        %1343 = vmatprep.subr.mxu0 0.0
        %1344 = vmatpush2.msra.mxu0 0.0
        %1345 = vmatprep.subr.mxu0 0.0
        %1346 = vmatpush2.msra.mxu0 0.0
        %1347 = vmatprep.subr.mxu0 0.0
        %1348 = vmatpush2.msra.mxu0 0.0
        %1349 = vmatprep.subr.mxu0 0.0
        %1350 = vmatpush2.msra.mxu0 0.0
        %1351 = vmatprep.subr.mxu0 0.0
        %1352 = vmatpush2.msra.mxu0 0.0
        %1353 = vmatprep.subr.mxu0 0.0
        %1354 = vmatpush2.msra.mxu0 0.0
        %1355 = vmatprep.subr.mxu0 0.0
        %1356 = vmatpush2.msra.mxu0 0.0
        %1357 = vmatprep.subr.mxu0 0.0
        %1358 = vmatpush2.msra.mxu0 0.0
        %1359 = vmatprep.subr.mxu0 0.0
        %1360 = vmatpush2.msra.mxu0 0.0
        %1361 = vmatprep.subr.mxu0 0.0
        %1362 = vmatpush2.msra.mxu0 0.0
        %1363 = vmatprep.subr.mxu0 0.0
        %1364 = vmatpush2.msra.mxu0 0.0
        %1365 = vmatprep.subr.mxu0 0.0
        %1366 = vmatpush2.msra.mxu0 0.0
        %1367 = vmatprep.mubr.f32.mxu0 0.0
        %1368 = vmatmul.mubr.f32.gmra.mxu0 %v1292
        %v1369 = vpop.f32.mrf.mxu0
        %v1370 = vadd.f32 %v1281, %v1369
        %v1371 = vpop.f32.mrf.mxu0
        %v1372 = vadd.f32 %v1283, %v1371
        %1373 = vmatprep.mubr.f32.mxu0 0.0
        %1374 = vmatmul.mubr.f32.gmra.mxu0 %v1295
        %v1375 = vpop.f32.mrf.mxu0
        %v1376 = vadd.f32 %v1287, %v1375
        %v1377 = vpop.f32.mrf.mxu0
        %v1378 = vadd.f32 %v1289, %v1377
        %1379 = vdwg.mxu0
        %v1380 = vld [vmem:[#allocation2 + $0x2] sm:$0xff]
        %v1381 = vld [vmem:[#allocation2 + $0xa] sm:$0x3]
        %s1382 = scalar_lea.vmem %s3, 352
        %v1383 = vld [vmem:[%s1382] sm:$0xff]
        %v1384 = vld [vmem:[%s1382 + $0x8] sm:$0xff]
        %v1385 = vld [vmem:[%s1382 + $0x10] sm:$0xff]
        %v1386 = vld [vmem:[%s1382 + $0x18] sm:$0xff]
        %v1387 = vld [vmem:[%s1382 + $0x20] sm:$0xff]
        %v1388 = vld [vmem:[%s1382 + $0x28] sm:$0xff]
        %v1389 = vld [vmem:[%s1382 + $0x30] sm:$0xff]
        %v1390 = vld [vmem:[%s1382 + $0x38] sm:$0xff]
        %v1391 = vld [vmem:[%s1382 + $0x40] sm:$0xff]
        %v1392 = vld [vmem:[%s1382 + $0x48] sm:$0xff]
        %v1393 = vld [vmem:[%s1382 + $0x50] sm:$0xff]
        %v1394 = vld [vmem:[%s1382 + $0x58] sm:$0xff]
        %v1395 = vld [vmem:[%s1382 + $0x60] sm:$0xff]
        %v1396 = vld [vmem:[%s1382 + $0x68] sm:$0xff]
        %v1397 = vld [vmem:[%s1382 + $0x70] sm:$0xff]
        %v1398 = vld [vmem:[%s1382 + $0x78] sm:$0xff]
        %v1399 = vld [vmem:[%s1382 + $0x80] sm:$0xff]
        %v1400 = vld [vmem:[%s1382 + $0x88] sm:$0xff]
        %v1401 = vld [vmem:[%s1382 + $0x90] sm:$0xff]
        %v1402 = vld [vmem:[%s1382 + $0x98] sm:$0xff]
        %v1403 = vld [vmem:[%s1382 + $0xa0] sm:$0xf]
        %v1404 = vld [vmem:[%s1382 + $0xa8] sm:$0xf]
        %v1406 = vsel %vm1201, %v1380, 0
        %v1409 = vsel %vm1201, %v1381, 0
        %v1412 = vsel %vm945, %v1403, 0
        %v1415 = vsel %vm945, %v1404, 0
        %1417 = vmatprep.subr.mxu0 0.0
        %1418 = vmatpush1.msra.mxu0 0.0
        %1419 = vmatprep.subr.mxu0 0.0
        %1420 = vmatpush1.msra.mxu0 0.0
        %1421 = vmatprep.subr.mxu0 0.0
        %1422 = vmatpush1.msra.mxu0 0.0
        %1423 = vmatprep.subr.mxu0 0.0
        %1424 = vmatpush1.msra.mxu0 0.0
        %1425 = vmatprep.subr.mxu0 0.0
        %1426 = vmatpush1.msra.mxu0 0.0
        %1427 = vmatprep.subr.mxu0 %v1415
        %1428 = vmatpush1.msra.mxu0 %v1412
        %1429 = vmatprep.subr.mxu0 %v1402
        %1430 = vmatpush1.msra.mxu0 %v1401
        %1431 = vmatprep.subr.mxu0 %v1400
        %1432 = vmatpush1.msra.mxu0 %v1399
        %1433 = vmatprep.subr.mxu0 %v1398
        %1434 = vmatpush1.msra.mxu0 %v1397
        %1435 = vmatprep.subr.mxu0 %v1396
        %1436 = vmatpush1.msra.mxu0 %v1395
        %1437 = vmatprep.subr.mxu0 %v1394
        %1438 = vmatpush1.msra.mxu0 %v1393
        %1439 = vmatprep.subr.mxu0 %v1392
        %1440 = vmatpush1.msra.mxu0 %v1391
        %1441 = vmatprep.subr.mxu0 %v1390
        %1442 = vmatpush1.msra.mxu0 %v1389
        %1443 = vmatprep.subr.mxu0 %v1388
        %1444 = vmatpush1.msra.mxu0 %v1387
        %1445 = vmatprep.subr.mxu0 %v1386
        %1446 = vmatpush1.msra.mxu0 %v1385
        %1447 = vmatprep.subr.mxu0 %v1384
        %1448 = vmatpush1.msra.mxu0 %v1383
        %1449 = vmatprep.subr.mxu0 0.0
        %1450 = vmatpush2.msra.mxu0 0.0
        %1451 = vmatprep.subr.mxu0 0.0
        %1452 = vmatpush2.msra.mxu0 0.0
        %1453 = vmatprep.subr.mxu0 0.0
        %1454 = vmatpush2.msra.mxu0 0.0
        %1455 = vmatprep.subr.mxu0 0.0
        %1456 = vmatpush2.msra.mxu0 0.0
        %1457 = vmatprep.subr.mxu0 0.0
        %1458 = vmatpush2.msra.mxu0 0.0
        %1459 = vmatprep.subr.mxu0 0.0
        %1460 = vmatpush2.msra.mxu0 0.0
        %1461 = vmatprep.subr.mxu0 0.0
        %1462 = vmatpush2.msra.mxu0 0.0
        %1463 = vmatprep.subr.mxu0 0.0
        %1464 = vmatpush2.msra.mxu0 0.0
        %1465 = vmatprep.subr.mxu0 0.0
        %1466 = vmatpush2.msra.mxu0 0.0
        %1467 = vmatprep.subr.mxu0 0.0
        %1468 = vmatpush2.msra.mxu0 0.0
        %1469 = vmatprep.subr.mxu0 0.0
        %1470 = vmatpush2.msra.mxu0 0.0
        %1471 = vmatprep.subr.mxu0 0.0
        %1472 = vmatpush2.msra.mxu0 0.0
        %1473 = vmatprep.subr.mxu0 0.0
        %1474 = vmatpush2.msra.mxu0 0.0
        %1475 = vmatprep.subr.mxu0 0.0
        %1476 = vmatpush2.msra.mxu0 0.0
        %1477 = vmatprep.subr.mxu0 0.0
        %1478 = vmatpush2.msra.mxu0 0.0
        %1479 = vmatprep.subr.mxu0 0.0
        %1480 = vmatpush2.msra.mxu0 0.0
        %1481 = vmatprep.mubr.f32.mxu0 0.0
        %1482 = vmatmul.mubr.f32.gmra.mxu0 %v1406
        %v1483 = vpop.f32.mrf.mxu0
        %v1484 = vadd.f32 0.0, %v1483
        %v1485 = vpop.f32.mrf.mxu0
        %v1486 = vadd.f32 0.0, %v1485
        %1487 = vmatprep.mubr.f32.mxu0 0.0
        %1488 = vmatmul.mubr.f32.gmra.mxu0 %v1409
        %v1489 = vpop.f32.mrf.mxu0
        %v1490 = vadd.f32 0.0, %v1489
        %v1491 = vpop.f32.mrf.mxu0
        %v1492 = vadd.f32 0.0, %v1491
        %1493 = vdwg.mxu0
        %v1494 = vadd.f32 %v1370, %v1484
        %v1495 = vadd.f32 %v1372, %v1486
        %v1496 = vadd.f32 %v1376, %v1490
        %v1497 = vadd.f32 %v1378, %v1492
        %v1498 = vld [vmem:[#allocation2 + $0x3] sm:$0xff]
        %v1499 = vld [vmem:[#allocation2 + $0xb] sm:$0x3]
        %s1500 = scalar_lea.vmem %s3, 528
        %v1501 = vld [vmem:[%s1500] sm:$0xff]
        %v1502 = vld [vmem:[%s1500 + $0x8] sm:$0xff]
        %v1503 = vld [vmem:[%s1500 + $0x10] sm:$0xff]
        %v1504 = vld [vmem:[%s1500 + $0x18] sm:$0xff]
        %v1505 = vld [vmem:[%s1500 + $0x20] sm:$0xff]
        %v1506 = vld [vmem:[%s1500 + $0x28] sm:$0xff]
        %v1507 = vld [vmem:[%s1500 + $0x30] sm:$0xff]
        %v1508 = vld [vmem:[%s1500 + $0x38] sm:$0xff]
        %v1509 = vld [vmem:[%s1500 + $0x40] sm:$0xff]
        %v1510 = vld [vmem:[%s1500 + $0x48] sm:$0xff]
        %v1511 = vld [vmem:[%s1500 + $0x50] sm:$0xff]
        %v1512 = vld [vmem:[%s1500 + $0x58] sm:$0xff]
        %v1513 = vld [vmem:[%s1500 + $0x60] sm:$0xff]
        %v1514 = vld [vmem:[%s1500 + $0x68] sm:$0xff]
        %v1515 = vld [vmem:[%s1500 + $0x70] sm:$0xff]
        %v1516 = vld [vmem:[%s1500 + $0x78] sm:$0xff]
        %v1517 = vld [vmem:[%s1500 + $0x80] sm:$0xff]
        %v1518 = vld [vmem:[%s1500 + $0x88] sm:$0xff]
        %v1519 = vld [vmem:[%s1500 + $0x90] sm:$0xff]
        %v1520 = vld [vmem:[%s1500 + $0x98] sm:$0xff]
        %v1521 = vld [vmem:[%s1500 + $0xa0] sm:$0xf]
        %v1522 = vld [vmem:[%s1500 + $0xa8] sm:$0xf]
        %v1524 = vsel %vm1201, %v1498, 0
        %v1527 = vsel %vm1201, %v1499, 0
        %v1530 = vsel %vm945, %v1521, 0
        %v1533 = vsel %vm945, %v1522, 0
        %1535 = vmatprep.subr.mxu0 0.0
        %1536 = vmatpush1.msra.mxu0 0.0
        %1537 = vmatprep.subr.mxu0 0.0
        %1538 = vmatpush1.msra.mxu0 0.0
        %1539 = vmatprep.subr.mxu0 0.0
        %1540 = vmatpush1.msra.mxu0 0.0
        %1541 = vmatprep.subr.mxu0 0.0
        %1542 = vmatpush1.msra.mxu0 0.0
        %1543 = vmatprep.subr.mxu0 0.0
        %1544 = vmatpush1.msra.mxu0 0.0
        %1545 = vmatprep.subr.mxu0 %v1533
        %1546 = vmatpush1.msra.mxu0 %v1530
        %1547 = vmatprep.subr.mxu0 %v1520
        %1548 = vmatpush1.msra.mxu0 %v1519
        %1549 = vmatprep.subr.mxu0 %v1518
        %1550 = vmatpush1.msra.mxu0 %v1517
        %1551 = vmatprep.subr.mxu0 %v1516
        %1552 = vmatpush1.msra.mxu0 %v1515
        %1553 = vmatprep.subr.mxu0 %v1514
        %1554 = vmatpush1.msra.mxu0 %v1513
        %1555 = vmatprep.subr.mxu0 %v1512
        %1556 = vmatpush1.msra.mxu0 %v1511
        %1557 = vmatprep.subr.mxu0 %v1510
        %1558 = vmatpush1.msra.mxu0 %v1509
        %1559 = vmatprep.subr.mxu0 %v1508
        %1560 = vmatpush1.msra.mxu0 %v1507
        %1561 = vmatprep.subr.mxu0 %v1506
        %1562 = vmatpush1.msra.mxu0 %v1505
        %1563 = vmatprep.subr.mxu0 %v1504
        %1564 = vmatpush1.msra.mxu0 %v1503
        %1565 = vmatprep.subr.mxu0 %v1502
        %1566 = vmatpush1.msra.mxu0 %v1501
        %1567 = vmatprep.subr.mxu0 0.0
        %1568 = vmatpush2.msra.mxu0 0.0
        %1569 = vmatprep.subr.mxu0 0.0
        %1570 = vmatpush2.msra.mxu0 0.0
        %1571 = vmatprep.subr.mxu0 0.0
        %1572 = vmatpush2.msra.mxu0 0.0
        %1573 = vmatprep.subr.mxu0 0.0
        %1574 = vmatpush2.msra.mxu0 0.0
        %1575 = vmatprep.subr.mxu0 0.0
        %1576 = vmatpush2.msra.mxu0 0.0
        %1577 = vmatprep.subr.mxu0 0.0
        %1578 = vmatpush2.msra.mxu0 0.0
        %1579 = vmatprep.subr.mxu0 0.0
        %1580 = vmatpush2.msra.mxu0 0.0
        %1581 = vmatprep.subr.mxu0 0.0
        %1582 = vmatpush2.msra.mxu0 0.0
        %1583 = vmatprep.subr.mxu0 0.0
        %1584 = vmatpush2.msra.mxu0 0.0
        %1585 = vmatprep.subr.mxu0 0.0
        %1586 = vmatpush2.msra.mxu0 0.0
        %1587 = vmatprep.subr.mxu0 0.0
        %1588 = vmatpush2.msra.mxu0 0.0
        %1589 = vmatprep.subr.mxu0 0.0
        %1590 = vmatpush2.msra.mxu0 0.0
        %1591 = vmatprep.subr.mxu0 0.0
        %1592 = vmatpush2.msra.mxu0 0.0
        %1593 = vmatprep.subr.mxu0 0.0
        %1594 = vmatpush2.msra.mxu0 0.0
        %1595 = vmatprep.subr.mxu0 0.0
        %1596 = vmatpush2.msra.mxu0 0.0
        %1597 = vmatprep.subr.mxu0 0.0
        %1598 = vmatpush2.msra.mxu0 0.0
        %1599 = vmatprep.mubr.f32.mxu0 0.0
        %1600 = vmatmul.mubr.f32.gmra.mxu0 %v1524
        %v1601 = vpop.f32.mrf.mxu0
        %v1602 = vadd.f32 0.0, %v1601
        %v1603 = vpop.f32.mrf.mxu0
        %v1604 = vadd.f32 0.0, %v1603
        %1605 = vmatprep.mubr.f32.mxu0 0.0
        %1606 = vmatmul.mubr.f32.gmra.mxu0 %v1527
        %v1607 = vpop.f32.mrf.mxu0
        %v1608 = vadd.f32 0.0, %v1607
        %v1609 = vpop.f32.mrf.mxu0
        %v1610 = vadd.f32 0.0, %v1609
        %1611 = vdwg.mxu0
        %v1612 = vadd.f32 %v1494, %v1602
        %v1613 = vadd.f32 %v1495, %v1604
        %v1614 = vadd.f32 %v1496, %v1608
        %v1615 = vadd.f32 %v1497, %v1610
        %v1616 = vld [vmem:[#allocation2 + $0x4] sm:$0xff]
        %v1617 = vld [vmem:[#allocation2 + $0xc] sm:$0x3]
        %s1618 = scalar_lea.vmem %s3, 704
        %v1619 = vld [vmem:[%s1618] sm:$0xff]
        %v1620 = vld [vmem:[%s1618 + $0x8] sm:$0xff]
        %v1621 = vld [vmem:[%s1618 + $0x10] sm:$0xff]
        %v1622 = vld [vmem:[%s1618 + $0x18] sm:$0xff]
        %v1623 = vld [vmem:[%s1618 + $0x20] sm:$0xff]
        %v1624 = vld [vmem:[%s1618 + $0x28] sm:$0xff]
        %v1625 = vld [vmem:[%s1618 + $0x30] sm:$0xff]
        %v1626 = vld [vmem:[%s1618 + $0x38] sm:$0xff]
        %v1627 = vld [vmem:[%s1618 + $0x40] sm:$0xff]
        %v1628 = vld [vmem:[%s1618 + $0x48] sm:$0xff]
        %v1629 = vld [vmem:[%s1618 + $0x50] sm:$0xff]
        %v1630 = vld [vmem:[%s1618 + $0x58] sm:$0xff]
        %v1631 = vld [vmem:[%s1618 + $0x60] sm:$0xff]
        %v1632 = vld [vmem:[%s1618 + $0x68] sm:$0xff]
        %v1633 = vld [vmem:[%s1618 + $0x70] sm:$0xff]
        %v1634 = vld [vmem:[%s1618 + $0x78] sm:$0xff]
        %v1635 = vld [vmem:[%s1618 + $0x80] sm:$0xff]
        %v1636 = vld [vmem:[%s1618 + $0x88] sm:$0xff]
        %v1637 = vld [vmem:[%s1618 + $0x90] sm:$0xff]
        %v1638 = vld [vmem:[%s1618 + $0x98] sm:$0xff]
        %v1639 = vld [vmem:[%s1618 + $0xa0] sm:$0xf]
        %v1640 = vld [vmem:[%s1618 + $0xa8] sm:$0xf]
        %v1642 = vsel %vm1201, %v1616, 0
        %v1645 = vsel %vm1201, %v1617, 0
        %v1648 = vsel %vm945, %v1639, 0
        %v1651 = vsel %vm945, %v1640, 0
        %1653 = vmatprep.subr.mxu0 0.0
        %1654 = vmatpush1.msra.mxu0 0.0
        %1655 = vmatprep.subr.mxu0 0.0
        %1656 = vmatpush1.msra.mxu0 0.0
        %1657 = vmatprep.subr.mxu0 0.0
        %1658 = vmatpush1.msra.mxu0 0.0
        %1659 = vmatprep.subr.mxu0 0.0
        %1660 = vmatpush1.msra.mxu0 0.0
        %1661 = vmatprep.subr.mxu0 0.0
        %1662 = vmatpush1.msra.mxu0 0.0
        %1663 = vmatprep.subr.mxu0 %v1651
        %1664 = vmatpush1.msra.mxu0 %v1648
        %1665 = vmatprep.subr.mxu0 %v1638
        %1666 = vmatpush1.msra.mxu0 %v1637
        %1667 = vmatprep.subr.mxu0 %v1636
        %1668 = vmatpush1.msra.mxu0 %v1635
        %1669 = vmatprep.subr.mxu0 %v1634
        %1670 = vmatpush1.msra.mxu0 %v1633
        %1671 = vmatprep.subr.mxu0 %v1632
        %1672 = vmatpush1.msra.mxu0 %v1631
        %1673 = vmatprep.subr.mxu0 %v1630
        %1674 = vmatpush1.msra.mxu0 %v1629
        %1675 = vmatprep.subr.mxu0 %v1628
        %1676 = vmatpush1.msra.mxu0 %v1627
        %1677 = vmatprep.subr.mxu0 %v1626
        %1678 = vmatpush1.msra.mxu0 %v1625
        %1679 = vmatprep.subr.mxu0 %v1624
        %1680 = vmatpush1.msra.mxu0 %v1623
        %1681 = vmatprep.subr.mxu0 %v1622
        %1682 = vmatpush1.msra.mxu0 %v1621
        %1683 = vmatprep.subr.mxu0 %v1620
        %1684 = vmatpush1.msra.mxu0 %v1619
        %1685 = vmatprep.subr.mxu0 0.0
        %1686 = vmatpush2.msra.mxu0 0.0
        %1687 = vmatprep.subr.mxu0 0.0
        %1688 = vmatpush2.msra.mxu0 0.0
        %1689 = vmatprep.subr.mxu0 0.0
        %1690 = vmatpush2.msra.mxu0 0.0
        %1691 = vmatprep.subr.mxu0 0.0
        %1692 = vmatpush2.msra.mxu0 0.0
        %1693 = vmatprep.subr.mxu0 0.0
        %1694 = vmatpush2.msra.mxu0 0.0
        %1695 = vmatprep.subr.mxu0 0.0
        %1696 = vmatpush2.msra.mxu0 0.0
        %1697 = vmatprep.subr.mxu0 0.0
        %1698 = vmatpush2.msra.mxu0 0.0
        %1699 = vmatprep.subr.mxu0 0.0
        %1700 = vmatpush2.msra.mxu0 0.0
        %1701 = vmatprep.subr.mxu0 0.0
        %1702 = vmatpush2.msra.mxu0 0.0
        %1703 = vmatprep.subr.mxu0 0.0
        %1704 = vmatpush2.msra.mxu0 0.0
        %1705 = vmatprep.subr.mxu0 0.0
        %1706 = vmatpush2.msra.mxu0 0.0
        %1707 = vmatprep.subr.mxu0 0.0
        %1708 = vmatpush2.msra.mxu0 0.0
        %1709 = vmatprep.subr.mxu0 0.0
        %1710 = vmatpush2.msra.mxu0 0.0
        %1711 = vmatprep.subr.mxu0 0.0
        %1712 = vmatpush2.msra.mxu0 0.0
        %1713 = vmatprep.subr.mxu0 0.0
        %1714 = vmatpush2.msra.mxu0 0.0
        %1715 = vmatprep.subr.mxu0 0.0
        %1716 = vmatpush2.msra.mxu0 0.0
        %1717 = vmatprep.mubr.f32.mxu0 0.0
        %1718 = vmatmul.mubr.f32.gmra.mxu0 %v1642
        %v1719 = vpop.f32.mrf.mxu0
        %v1720 = vadd.f32 0.0, %v1719
        %v1721 = vpop.f32.mrf.mxu0
        %v1722 = vadd.f32 0.0, %v1721
        %1723 = vmatprep.mubr.f32.mxu0 0.0
        %1724 = vmatmul.mubr.f32.gmra.mxu0 %v1645
        %v1725 = vpop.f32.mrf.mxu0
        %v1726 = vadd.f32 0.0, %v1725
        %v1727 = vpop.f32.mrf.mxu0
        %v1728 = vadd.f32 0.0, %v1727
        %1729 = vdwg.mxu0
        %v1730 = vadd.f32 %v1612, %v1720
        %v1731 = vadd.f32 %v1613, %v1722
        %v1732 = vadd.f32 %v1614, %v1726
        %v1733 = vadd.f32 %v1615, %v1728
        %1738 = vrot.lane.b32.xlu0 %v1730, 48
        %v1739 = vpop.permute.xlu0 %1738
        %1740 = vrot.lane.b32.xlu0 %v1731, 48
        %v1741 = vpop.permute.xlu0 %1740
        %1742 = vrot.lane.b32.xlu0 %v1732, 48
        %v1743 = vpop.permute.xlu0 %1742
        %1744 = vrot.lane.b32.xlu0 %v1733, 48
        %v1745 = vpop.permute.xlu0 %1744
        %vm1746 = vcmask 392192
        %v1747 = vsel %vm1746, %v1739, %v1741
        %v1748 = vsel %vm1746, %v1743, %v1745
        %v1751 = vmax.f32 %v1730, %v1747
        %v1752 = vmax.f32 %v1732, %v1748
        %v1753 = vld [vmem:[%s4] sm:$0x1]
        %v1754 = vld [vmem:[%s6] sm:$0x1]
        %v1756 = vrot.slane %v1751, 1
        %v1758 = vmax.f32 %v1751, %v1756
        %v1759 = vadd.f32 %v1758, %v1753
        %v1760 = vmax.f32 %v1759, 0.0
        %v1761 = vld [vmem:[%s5] sm:$0xff]
        %v1762 = vld [vmem:[%s5 + $0x8] sm:$0xff]
        %v1763 = vld [vmem:[%s5 + $0x10] sm:$0xff]
        %v1764 = vld [vmem:[%s5 + $0x18] sm:$0xff]
        %v1765 = vld [vmem:[%s5 + $0x20] sm:$0xff]
        %v1766 = vld [vmem:[%s5 + $0x28] sm:$0xff]
        %v1767 = vld [vmem:[%s5 + $0x30] sm:$0xff]
        %v1768 = vld [vmem:[%s5 + $0x38] sm:$0xff]
        %v1769 = vld [vmem:[%s5 + $0x40] sm:$0xff]
        %v1770 = vld [vmem:[%s5 + $0x48] sm:$0xff]
        %vm1771 = vcmask 654336
        %v1773 = vsel %vm1771, %v1760, 0
        %1775 = vmatprep.subr.mxu0 0.0
        %1776 = vmatpush1.msra.mxu0 0.0
        %1777 = vmatprep.subr.mxu0 0.0
        %1778 = vmatpush1.msra.mxu0 0.0
        %1779 = vmatprep.subr.mxu0 0.0
        %1780 = vmatpush1.msra.mxu0 0.0
        %1781 = vmatprep.subr.mxu0 0.0
        %1782 = vmatpush1.msra.mxu0 0.0
        %1783 = vmatprep.subr.mxu0 0.0
        %1784 = vmatpush1.msra.mxu0 0.0
        %1785 = vmatprep.subr.mxu0 0.0
        %1786 = vmatpush1.msra.mxu0 0.0
        %1787 = vmatprep.subr.mxu0 0.0
        %1788 = vmatpush1.msra.mxu0 %v1770
        %1789 = vmatprep.subr.mxu0 0.0
        %1790 = vmatpush1.msra.mxu0 %v1769
        %1791 = vmatprep.subr.mxu0 0.0
        %1792 = vmatpush1.msra.mxu0 %v1768
        %1793 = vmatprep.subr.mxu0 0.0
        %1794 = vmatpush1.msra.mxu0 %v1767
        %1795 = vmatprep.subr.mxu0 0.0
        %1796 = vmatpush1.msra.mxu0 %v1766
        %1797 = vmatprep.subr.mxu0 0.0
        %1798 = vmatpush1.msra.mxu0 %v1765
        %1799 = vmatprep.subr.mxu0 0.0
        %1800 = vmatpush1.msra.mxu0 %v1764
        %1801 = vmatprep.subr.mxu0 0.0
        %1802 = vmatpush1.msra.mxu0 %v1763
        %1803 = vmatprep.subr.mxu0 0.0
        %1804 = vmatpush1.msra.mxu0 %v1762
        %1805 = vmatprep.subr.mxu0 0.0
        %1806 = vmatpush1.msra.mxu0 %v1761
        %1807 = vmatprep.subr.mxu0 0.0
        %1808 = vmatpush2.msra.mxu0 0.0
        %1809 = vmatprep.subr.mxu0 0.0
        %1810 = vmatpush2.msra.mxu0 0.0
        %1811 = vmatprep.subr.mxu0 0.0
        %1812 = vmatpush2.msra.mxu0 0.0
        %1813 = vmatprep.subr.mxu0 0.0
        %1814 = vmatpush2.msra.mxu0 0.0
        %1815 = vmatprep.subr.mxu0 0.0
        %1816 = vmatpush2.msra.mxu0 0.0
        %1817 = vmatprep.subr.mxu0 0.0
        %1818 = vmatpush2.msra.mxu0 0.0
        %1819 = vmatprep.subr.mxu0 0.0
        %1820 = vmatpush2.msra.mxu0 0.0
        %1821 = vmatprep.subr.mxu0 0.0
        %1822 = vmatpush2.msra.mxu0 0.0
        %1823 = vmatprep.subr.mxu0 0.0
        %1824 = vmatpush2.msra.mxu0 0.0
        %1825 = vmatprep.subr.mxu0 0.0
        %1826 = vmatpush2.msra.mxu0 0.0
        %1827 = vmatprep.subr.mxu0 0.0
        %1828 = vmatpush2.msra.mxu0 0.0
        %1829 = vmatprep.subr.mxu0 0.0
        %1830 = vmatpush2.msra.mxu0 0.0
        %1831 = vmatprep.subr.mxu0 0.0
        %1832 = vmatpush2.msra.mxu0 0.0
        %1833 = vmatprep.subr.mxu0 0.0
        %1834 = vmatpush2.msra.mxu0 0.0
        %1835 = vmatprep.subr.mxu0 0.0
        %1836 = vmatpush2.msra.mxu0 0.0
        %1837 = vmatprep.subr.mxu0 0.0
        %1838 = vmatpush2.msra.mxu0 0.0
        %1839 = vmatprep.mubr.f32.mxu0 0.0
        %1840 = vmatmul.mubr.f32.gmra.mxu0 %v1773
        %v1841 = vpop.f32.mrf.mxu0
        %v1842 = vadd.f32 0.0, %v1841
        %v1843 = vpop.f32.mrf.mxu0
        %1844 = vdwg.mxu0
        %v1845 = vadd.f32 %v1754, %v1842
        %v1847 = vlaneseq
        %v1848 = vshrl.u32 %v1847, 7
        %v1849 = vsub.s32 0, %v1848
        %v1850 = vrot.slane %v1753, %v1849
        %v1852 = vadd.f32 %v1758, %v1850
        %v1853 = vmax.f32 %v1852, 0.0
        %v1854 = vld [vmem:[%s5 + $0x50] sm:$0xff]
        %v1855 = vld [vmem:[%s5 + $0x58] sm:$0xff]
        %v1856 = vld [vmem:[%s5 + $0x60] sm:$0xff]
        %v1857 = vld [vmem:[%s5 + $0x68] sm:$0xff]
        %v1858 = vld [vmem:[%s5 + $0x70] sm:$0xff]
        %v1859 = vld [vmem:[%s5 + $0x78] sm:$0xff]
        %v1860 = vld [vmem:[%s5 + $0x80] sm:$0xff]
        %v1861 = vld [vmem:[%s5 + $0x88] sm:$0xff]
        %v1862 = vld [vmem:[%s5 + $0x90] sm:$0xff]
        %v1863 = vld [vmem:[%s5 + $0x98] sm:$0xff]
        %v1865 = vrot.slane %v1853, 2
        %v1866 = vsel %vm1771, %v1865, 0
        %1868 = vmatprep.subr.mxu0 0.0
        %1869 = vmatpush1.msra.mxu0 0.0
        %1870 = vmatprep.subr.mxu0 0.0
        %1871 = vmatpush1.msra.mxu0 0.0
        %1872 = vmatprep.subr.mxu0 0.0
        %1873 = vmatpush1.msra.mxu0 0.0
        %1874 = vmatprep.subr.mxu0 0.0
        %1875 = vmatpush1.msra.mxu0 0.0
        %1876 = vmatprep.subr.mxu0 0.0
        %1877 = vmatpush1.msra.mxu0 0.0
        %1878 = vmatprep.subr.mxu0 0.0
        %1879 = vmatpush1.msra.mxu0 0.0
        %1880 = vmatprep.subr.mxu0 0.0
        %1881 = vmatpush1.msra.mxu0 %v1863
        %1882 = vmatprep.subr.mxu0 0.0
        %1883 = vmatpush1.msra.mxu0 %v1862
        %1884 = vmatprep.subr.mxu0 0.0
        %1885 = vmatpush1.msra.mxu0 %v1861
        %1886 = vmatprep.subr.mxu0 0.0
        %1887 = vmatpush1.msra.mxu0 %v1860
        %1888 = vmatprep.subr.mxu0 0.0
        %1889 = vmatpush1.msra.mxu0 %v1859
        %1890 = vmatprep.subr.mxu0 0.0
        %1891 = vmatpush1.msra.mxu0 %v1858
        %1892 = vmatprep.subr.mxu0 0.0
        %1893 = vmatpush1.msra.mxu0 %v1857
        %1894 = vmatprep.subr.mxu0 0.0
        %1895 = vmatpush1.msra.mxu0 %v1856
        %1896 = vmatprep.subr.mxu0 0.0
        %1897 = vmatpush1.msra.mxu0 %v1855
        %1898 = vmatprep.subr.mxu0 0.0
        %1899 = vmatpush1.msra.mxu0 %v1854
        %1900 = vmatprep.subr.mxu0 0.0
        %1901 = vmatpush2.msra.mxu0 0.0
        %1902 = vmatprep.subr.mxu0 0.0
        %1903 = vmatpush2.msra.mxu0 0.0
        %1904 = vmatprep.subr.mxu0 0.0
        %1905 = vmatpush2.msra.mxu0 0.0
        %1906 = vmatprep.subr.mxu0 0.0
        %1907 = vmatpush2.msra.mxu0 0.0
        %1908 = vmatprep.subr.mxu0 0.0
        %1909 = vmatpush2.msra.mxu0 0.0
        %1910 = vmatprep.subr.mxu0 0.0
        %1911 = vmatpush2.msra.mxu0 0.0
        %1912 = vmatprep.subr.mxu0 0.0
        %1913 = vmatpush2.msra.mxu0 0.0
        %1914 = vmatprep.subr.mxu0 0.0
        %1915 = vmatpush2.msra.mxu0 0.0
        %1916 = vmatprep.subr.mxu0 0.0
        %1917 = vmatpush2.msra.mxu0 0.0
        %1918 = vmatprep.subr.mxu0 0.0
        %1919 = vmatpush2.msra.mxu0 0.0
        %1920 = vmatprep.subr.mxu0 0.0
        %1921 = vmatpush2.msra.mxu0 0.0
        %1922 = vmatprep.subr.mxu0 0.0
        %1923 = vmatpush2.msra.mxu0 0.0
        %1924 = vmatprep.subr.mxu0 0.0
        %1925 = vmatpush2.msra.mxu0 0.0
        %1926 = vmatprep.subr.mxu0 0.0
        %1927 = vmatpush2.msra.mxu0 0.0
        %1928 = vmatprep.subr.mxu0 0.0
        %1929 = vmatpush2.msra.mxu0 0.0
        %1930 = vmatprep.subr.mxu0 0.0
        %1931 = vmatpush2.msra.mxu0 0.0
        %1932 = vmatprep.mubr.f32.mxu0 0.0
        %1933 = vmatmul.mubr.f32.gmra.mxu0 %v1866
        %v1934 = vpop.f32.mrf.mxu0
        %v1935 = vadd.f32 0.0, %v1934
        %v1936 = vpop.f32.mrf.mxu0
        %1937 = vdwg.mxu0
        %v1938 = vadd.f32 %v1845, %v1935
        %v1939 = vld [vmem:[%s5 + $0xa0] sm:$0xff]
        %v1940 = vld [vmem:[%s5 + $0xa8] sm:$0xff]
        %v1941 = vld [vmem:[%s5 + $0xb0] sm:$0xff]
        %v1942 = vld [vmem:[%s5 + $0xb8] sm:$0xff]
        %v1943 = vld [vmem:[%s5 + $0xc0] sm:$0xff]
        %v1944 = vld [vmem:[%s5 + $0xc8] sm:$0xff]
        %v1945 = vld [vmem:[%s5 + $0xd0] sm:$0xff]
        %v1946 = vld [vmem:[%s5 + $0xd8] sm:$0xff]
        %v1947 = vld [vmem:[%s5 + $0xe0] sm:$0xff]
        %v1948 = vld [vmem:[%s5 + $0xe8] sm:$0xff]
        %v1949 = vrot.slane %v1853, 4
        %v1950 = vsel %vm1771, %v1949, 0
        %1952 = vmatprep.subr.mxu0 0.0
        %1953 = vmatpush1.msra.mxu0 0.0
        %1954 = vmatprep.subr.mxu0 0.0
        %1955 = vmatpush1.msra.mxu0 0.0
        %1956 = vmatprep.subr.mxu0 0.0
        %1957 = vmatpush1.msra.mxu0 0.0
        %1958 = vmatprep.subr.mxu0 0.0
        %1959 = vmatpush1.msra.mxu0 0.0
        %1960 = vmatprep.subr.mxu0 0.0
        %1961 = vmatpush1.msra.mxu0 0.0
        %1962 = vmatprep.subr.mxu0 0.0
        %1963 = vmatpush1.msra.mxu0 0.0
        %1964 = vmatprep.subr.mxu0 0.0
        %1965 = vmatpush1.msra.mxu0 %v1948
        %1966 = vmatprep.subr.mxu0 0.0
        %1967 = vmatpush1.msra.mxu0 %v1947
        %1968 = vmatprep.subr.mxu0 0.0
        %1969 = vmatpush1.msra.mxu0 %v1946
        %1970 = vmatprep.subr.mxu0 0.0
        %1971 = vmatpush1.msra.mxu0 %v1945
        %1972 = vmatprep.subr.mxu0 0.0
        %1973 = vmatpush1.msra.mxu0 %v1944
        %1974 = vmatprep.subr.mxu0 0.0
        %1975 = vmatpush1.msra.mxu0 %v1943
        %1976 = vmatprep.subr.mxu0 0.0
        %1977 = vmatpush1.msra.mxu0 %v1942
        %1978 = vmatprep.subr.mxu0 0.0
        %1979 = vmatpush1.msra.mxu0 %v1941
        %1980 = vmatprep.subr.mxu0 0.0
        %1981 = vmatpush1.msra.mxu0 %v1940
        %1982 = vmatprep.subr.mxu0 0.0
        %1983 = vmatpush1.msra.mxu0 %v1939
        %1984 = vmatprep.subr.mxu0 0.0
        %1985 = vmatpush2.msra.mxu0 0.0
        %1986 = vmatprep.subr.mxu0 0.0
        %1987 = vmatpush2.msra.mxu0 0.0
        %1988 = vmatprep.subr.mxu0 0.0
        %1989 = vmatpush2.msra.mxu0 0.0
        %1990 = vmatprep.subr.mxu0 0.0
        %1991 = vmatpush2.msra.mxu0 0.0
        %1992 = vmatprep.subr.mxu0 0.0
        %1993 = vmatpush2.msra.mxu0 0.0
        %1994 = vmatprep.subr.mxu0 0.0
        %1995 = vmatpush2.msra.mxu0 0.0
        %1996 = vmatprep.subr.mxu0 0.0
        %1997 = vmatpush2.msra.mxu0 0.0
        %1998 = vmatprep.subr.mxu0 0.0
        %1999 = vmatpush2.msra.mxu0 0.0
        %2000 = vmatprep.subr.mxu0 0.0
        %2001 = vmatpush2.msra.mxu0 0.0
        %2002 = vmatprep.subr.mxu0 0.0
        %2003 = vmatpush2.msra.mxu0 0.0
        %2004 = vmatprep.subr.mxu0 0.0
        %2005 = vmatpush2.msra.mxu0 0.0
        %2006 = vmatprep.subr.mxu0 0.0
        %2007 = vmatpush2.msra.mxu0 0.0
        %2008 = vmatprep.subr.mxu0 0.0
        %2009 = vmatpush2.msra.mxu0 0.0
        %2010 = vmatprep.subr.mxu0 0.0
        %2011 = vmatpush2.msra.mxu0 0.0
        %2012 = vmatprep.subr.mxu0 0.0
        %2013 = vmatpush2.msra.mxu0 0.0
        %2014 = vmatprep.subr.mxu0 0.0
        %2015 = vmatpush2.msra.mxu0 0.0
        %2016 = vmatprep.mubr.f32.mxu0 0.0
        %2017 = vmatmul.mubr.f32.gmra.mxu0 %v1950
        %v2018 = vpop.f32.mrf.mxu0
        %v2019 = vadd.f32 0.0, %v2018
        %v2020 = vpop.f32.mrf.mxu0
        %2021 = vdwg.mxu0
        %v2022 = vadd.f32 %v1938, %v2019
        %v2023 = vld [vmem:[%s5 + $0xf0] sm:$0xff]
        %v2024 = vld [vmem:[%s5 + $0xf8] sm:$0xff]
        %v2025 = vld [vmem:[%s5 + $0x100] sm:$0xff]
        %v2026 = vld [vmem:[%s5 + $0x108] sm:$0xff]
        %v2027 = vld [vmem:[%s5 + $0x110] sm:$0xff]
        %v2028 = vld [vmem:[%s5 + $0x118] sm:$0xff]
        %v2029 = vld [vmem:[%s5 + $0x120] sm:$0xff]
        %v2030 = vld [vmem:[%s5 + $0x128] sm:$0xff]
        %v2031 = vld [vmem:[%s5 + $0x130] sm:$0xff]
        %v2032 = vld [vmem:[%s5 + $0x138] sm:$0xff]
        %v2033 = vrot.slane %v1853, 6
        %v2034 = vsel %vm1771, %v2033, 0
        %2036 = vmatprep.subr.mxu0 0.0
        %2037 = vmatpush1.msra.mxu0 0.0
        %2038 = vmatprep.subr.mxu0 0.0
        %2039 = vmatpush1.msra.mxu0 0.0
        %2040 = vmatprep.subr.mxu0 0.0
        %2041 = vmatpush1.msra.mxu0 0.0
        %2042 = vmatprep.subr.mxu0 0.0
        %2043 = vmatpush1.msra.mxu0 0.0
        %2044 = vmatprep.subr.mxu0 0.0
        %2045 = vmatpush1.msra.mxu0 0.0
        %2046 = vmatprep.subr.mxu0 0.0
        %2047 = vmatpush1.msra.mxu0 0.0
        %2048 = vmatprep.subr.mxu0 0.0
        %2049 = vmatpush1.msra.mxu0 %v2032
        %2050 = vmatprep.subr.mxu0 0.0
        %2051 = vmatpush1.msra.mxu0 %v2031
        %2052 = vmatprep.subr.mxu0 0.0
        %2053 = vmatpush1.msra.mxu0 %v2030
        %2054 = vmatprep.subr.mxu0 0.0
        %2055 = vmatpush1.msra.mxu0 %v2029
        %2056 = vmatprep.subr.mxu0 0.0
        %2057 = vmatpush1.msra.mxu0 %v2028
        %2058 = vmatprep.subr.mxu0 0.0
        %2059 = vmatpush1.msra.mxu0 %v2027
        %2060 = vmatprep.subr.mxu0 0.0
        %2061 = vmatpush1.msra.mxu0 %v2026
        %2062 = vmatprep.subr.mxu0 0.0
        %2063 = vmatpush1.msra.mxu0 %v2025
        %2064 = vmatprep.subr.mxu0 0.0
        %2065 = vmatpush1.msra.mxu0 %v2024
        %2066 = vmatprep.subr.mxu0 0.0
        %2067 = vmatpush1.msra.mxu0 %v2023
        %2068 = vmatprep.subr.mxu0 0.0
        %2069 = vmatpush2.msra.mxu0 0.0
        %2070 = vmatprep.subr.mxu0 0.0
        %2071 = vmatpush2.msra.mxu0 0.0
        %2072 = vmatprep.subr.mxu0 0.0
        %2073 = vmatpush2.msra.mxu0 0.0
        %2074 = vmatprep.subr.mxu0 0.0
        %2075 = vmatpush2.msra.mxu0 0.0
        %2076 = vmatprep.subr.mxu0 0.0
        %2077 = vmatpush2.msra.mxu0 0.0
        %2078 = vmatprep.subr.mxu0 0.0
        %2079 = vmatpush2.msra.mxu0 0.0
        %2080 = vmatprep.subr.mxu0 0.0
        %2081 = vmatpush2.msra.mxu0 0.0
        %2082 = vmatprep.subr.mxu0 0.0
        %2083 = vmatpush2.msra.mxu0 0.0
        %2084 = vmatprep.subr.mxu0 0.0
        %2085 = vmatpush2.msra.mxu0 0.0
        %2086 = vmatprep.subr.mxu0 0.0
        %2087 = vmatpush2.msra.mxu0 0.0
        %2088 = vmatprep.subr.mxu0 0.0
        %2089 = vmatpush2.msra.mxu0 0.0
        %2090 = vmatprep.subr.mxu0 0.0
        %2091 = vmatpush2.msra.mxu0 0.0
        %2092 = vmatprep.subr.mxu0 0.0
        %2093 = vmatpush2.msra.mxu0 0.0
        %2094 = vmatprep.subr.mxu0 0.0
        %2095 = vmatpush2.msra.mxu0 0.0
        %2096 = vmatprep.subr.mxu0 0.0
        %2097 = vmatpush2.msra.mxu0 0.0
        %2098 = vmatprep.subr.mxu0 0.0
        %2099 = vmatpush2.msra.mxu0 0.0
        %2100 = vmatprep.mubr.f32.mxu0 0.0
        %2101 = vmatmul.mubr.f32.gmra.mxu0 %v2034
        %v2102 = vpop.f32.mrf.mxu0
        %v2103 = vadd.f32 0.0, %v2102
        %v2104 = vpop.f32.mrf.mxu0
        %2105 = vdwg.mxu0
        %v2106 = vadd.f32 %v2022, %v2103
        %v2108 = vrot.slane %v1752, 1
        %v2110 = vmax.f32 %v1752, %v2108
        %v2111 = vadd.f32 %v2110, %v1753
        %v2112 = vmax.f32 %v2111, 0.0
        %v2113 = vld [vmem:[%s5 + $0x140] sm:$0xff]
        %v2114 = vld [vmem:[%s5 + $0x148] sm:$0xff]
        %v2115 = vld [vmem:[%s5 + $0x150] sm:$0xff]
        %v2116 = vld [vmem:[%s5 + $0x158] sm:$0xff]
        %v2117 = vld [vmem:[%s5 + $0x160] sm:$0xff]
        %v2118 = vld [vmem:[%s5 + $0x168] sm:$0xff]
        %v2119 = vld [vmem:[%s5 + $0x170] sm:$0xff]
        %v2120 = vld [vmem:[%s5 + $0x178] sm:$0xff]
        %v2121 = vld [vmem:[%s5 + $0x180] sm:$0xff]
        %v2122 = vld [vmem:[%s5 + $0x188] sm:$0xff]
        %v2124 = vsel %vm1771, %v2112, 0
        %2126 = vmatprep.subr.mxu0 0.0
        %2127 = vmatpush1.msra.mxu0 0.0
        %2128 = vmatprep.subr.mxu0 0.0
        %2129 = vmatpush1.msra.mxu0 0.0
        %2130 = vmatprep.subr.mxu0 0.0
        %2131 = vmatpush1.msra.mxu0 0.0
        %2132 = vmatprep.subr.mxu0 0.0
        %2133 = vmatpush1.msra.mxu0 0.0
        %2134 = vmatprep.subr.mxu0 0.0
        %2135 = vmatpush1.msra.mxu0 0.0
        %2136 = vmatprep.subr.mxu0 0.0
        %2137 = vmatpush1.msra.mxu0 0.0
        %2138 = vmatprep.subr.mxu0 0.0
        %2139 = vmatpush1.msra.mxu0 %v2122
        %2140 = vmatprep.subr.mxu0 0.0
        %2141 = vmatpush1.msra.mxu0 %v2121
        %2142 = vmatprep.subr.mxu0 0.0
        %2143 = vmatpush1.msra.mxu0 %v2120
        %2144 = vmatprep.subr.mxu0 0.0
        %2145 = vmatpush1.msra.mxu0 %v2119
        %2146 = vmatprep.subr.mxu0 0.0
        %2147 = vmatpush1.msra.mxu0 %v2118
        %2148 = vmatprep.subr.mxu0 0.0
        %2149 = vmatpush1.msra.mxu0 %v2117
        %2150 = vmatprep.subr.mxu0 0.0
        %2151 = vmatpush1.msra.mxu0 %v2116
        %2152 = vmatprep.subr.mxu0 0.0
        %2153 = vmatpush1.msra.mxu0 %v2115
        %2154 = vmatprep.subr.mxu0 0.0
        %2155 = vmatpush1.msra.mxu0 %v2114
        %2156 = vmatprep.subr.mxu0 0.0
        %2157 = vmatpush1.msra.mxu0 %v2113
        %2158 = vmatprep.subr.mxu0 0.0
        %2159 = vmatpush2.msra.mxu0 0.0
        %2160 = vmatprep.subr.mxu0 0.0
        %2161 = vmatpush2.msra.mxu0 0.0
        %2162 = vmatprep.subr.mxu0 0.0
        %2163 = vmatpush2.msra.mxu0 0.0
        %2164 = vmatprep.subr.mxu0 0.0
        %2165 = vmatpush2.msra.mxu0 0.0
        %2166 = vmatprep.subr.mxu0 0.0
        %2167 = vmatpush2.msra.mxu0 0.0
        %2168 = vmatprep.subr.mxu0 0.0
        %2169 = vmatpush2.msra.mxu0 0.0
        %2170 = vmatprep.subr.mxu0 0.0
        %2171 = vmatpush2.msra.mxu0 0.0
        %2172 = vmatprep.subr.mxu0 0.0
        %2173 = vmatpush2.msra.mxu0 0.0
        %2174 = vmatprep.subr.mxu0 0.0
        %2175 = vmatpush2.msra.mxu0 0.0
        %2176 = vmatprep.subr.mxu0 0.0
        %2177 = vmatpush2.msra.mxu0 0.0
        %2178 = vmatprep.subr.mxu0 0.0
        %2179 = vmatpush2.msra.mxu0 0.0
        %2180 = vmatprep.subr.mxu0 0.0
        %2181 = vmatpush2.msra.mxu0 0.0
        %2182 = vmatprep.subr.mxu0 0.0
        %2183 = vmatpush2.msra.mxu0 0.0
        %2184 = vmatprep.subr.mxu0 0.0
        %2185 = vmatpush2.msra.mxu0 0.0
        %2186 = vmatprep.subr.mxu0 0.0
        %2187 = vmatpush2.msra.mxu0 0.0
        %2188 = vmatprep.subr.mxu0 0.0
        %2189 = vmatpush2.msra.mxu0 0.0
        %2190 = vmatprep.mubr.f32.mxu0 0.0
        %2191 = vmatmul.mubr.f32.gmra.mxu0 %v2124
        %v2192 = vpop.f32.mrf.mxu0
        %v2193 = vadd.f32 0.0, %v2192
        %v2194 = vpop.f32.mrf.mxu0
        %2195 = vdwg.mxu0
        %v2196 = vadd.f32 %v2106, %v2193
        %v2197 = vmax.f32 %v2196, 0.0
        %v2198 = vld [vmem:[%s7] sm:$0xff]
        %v2199 = vld [vmem:[%s7 + $0x8] sm:$0xff]
        %v2200 = vld [vmem:[%s7 + $0x10] sm:$0xff]
        %v2201 = vld [vmem:[%s7 + $0x18] sm:$0xff]
        %v2202 = vld [vmem:[%s7 + $0x20] sm:$0xff]
        %v2203 = vld [vmem:[%s7 + $0x28] sm:$0xff]
        %v2204 = vld [vmem:[%s7 + $0x30] sm:$0xff]
        %v2205 = vld [vmem:[%s7 + $0x38] sm:$0xff]
        %v2206 = vld [vmem:[%s7 + $0x40] sm:$0xff]
        %v2207 = vld [vmem:[%s7 + $0x48] sm:$0xff]
        %v2208 = vld [vmem:[%s7 + $0x50] sm:$0xff]
        %v2209 = vld [vmem:[%s7 + $0x58] sm:$0xff]
        %v2210 = vld [vmem:[%s7 + $0x60] sm:$0xff]
        %v2211 = vld [vmem:[%s7 + $0x68] sm:$0xff]
        %v2212 = vld [vmem:[%s7 + $0x70] sm:$0xff]
        %v2213 = vld [vmem:[%s8] sm:$0x1]
        %vm2214 = vcmask 982016
        %v2216 = vsel %vm2214, %v2197, 0
        %2218 = vmatprep.subr.mxu0 0.0
        %2219 = vmatpush1.msra.mxu0 0.0
        %2220 = vmatprep.subr.mxu0 0.0
        %2221 = vmatpush1.msra.mxu0 %v2212
        %2222 = vmatprep.subr.mxu0 0.0
        %2223 = vmatpush1.msra.mxu0 %v2211
        %2224 = vmatprep.subr.mxu0 0.0
        %2225 = vmatpush1.msra.mxu0 %v2210
        %2226 = vmatprep.subr.mxu0 0.0
        %2227 = vmatpush1.msra.mxu0 %v2209
        %2228 = vmatprep.subr.mxu0 0.0
        %2229 = vmatpush1.msra.mxu0 %v2208
        %2230 = vmatprep.subr.mxu0 0.0
        %2231 = vmatpush1.msra.mxu0 %v2207
        %2232 = vmatprep.subr.mxu0 0.0
        %2233 = vmatpush1.msra.mxu0 %v2206
        %2234 = vmatprep.subr.mxu0 0.0
        %2235 = vmatpush1.msra.mxu0 %v2205
        %2236 = vmatprep.subr.mxu0 0.0
        %2237 = vmatpush1.msra.mxu0 %v2204
        %2238 = vmatprep.subr.mxu0 0.0
        %2239 = vmatpush1.msra.mxu0 %v2203
        %2240 = vmatprep.subr.mxu0 0.0
        %2241 = vmatpush1.msra.mxu0 %v2202
        %2242 = vmatprep.subr.mxu0 0.0
        %2243 = vmatpush1.msra.mxu0 %v2201
        %2244 = vmatprep.subr.mxu0 0.0
        %2245 = vmatpush1.msra.mxu0 %v2200
        %2246 = vmatprep.subr.mxu0 0.0
        %2247 = vmatpush1.msra.mxu0 %v2199
        %2248 = vmatprep.subr.mxu0 0.0
        %2249 = vmatpush1.msra.mxu0 %v2198
        %2250 = vmatprep.subr.mxu0 0.0
        %2251 = vmatpush2.msra.mxu0 0.0
        %2252 = vmatprep.subr.mxu0 0.0
        %2253 = vmatpush2.msra.mxu0 0.0
        %2254 = vmatprep.subr.mxu0 0.0
        %2255 = vmatpush2.msra.mxu0 0.0
        %2256 = vmatprep.subr.mxu0 0.0
        %2257 = vmatpush2.msra.mxu0 0.0
        %2258 = vmatprep.subr.mxu0 0.0
        %2259 = vmatpush2.msra.mxu0 0.0
        %2260 = vmatprep.subr.mxu0 0.0
        %2261 = vmatpush2.msra.mxu0 0.0
        %2262 = vmatprep.subr.mxu0 0.0
        %2263 = vmatpush2.msra.mxu0 0.0
        %2264 = vmatprep.subr.mxu0 0.0
        %2265 = vmatpush2.msra.mxu0 0.0
        %2266 = vmatprep.subr.mxu0 0.0
        %2267 = vmatpush2.msra.mxu0 0.0
        %2268 = vmatprep.subr.mxu0 0.0
        %2269 = vmatpush2.msra.mxu0 0.0
        %2270 = vmatprep.subr.mxu0 0.0
        %2271 = vmatpush2.msra.mxu0 0.0
        %2272 = vmatprep.subr.mxu0 0.0
        %2273 = vmatpush2.msra.mxu0 0.0
        %2274 = vmatprep.subr.mxu0 0.0
        %2275 = vmatpush2.msra.mxu0 0.0
        %2276 = vmatprep.subr.mxu0 0.0
        %2277 = vmatpush2.msra.mxu0 0.0
        %2278 = vmatprep.subr.mxu0 0.0
        %2279 = vmatpush2.msra.mxu0 0.0
        %2280 = vmatprep.subr.mxu0 0.0
        %2281 = vmatpush2.msra.mxu0 0.0
        %2282 = vmatprep.mubr.f32.mxu0 0.0
        %2283 = vmatmul.mubr.f32.gmra.mxu0 %v2216
        %v2284 = vpop.f32.mrf.mxu0
        %v2285 = vadd.f32 %v2213, %v2284
        %v2286 = vpop.f32.mrf.mxu0
        %2287 = vdwg.mxu0
        %v2288 = vmax.f32 %v2285, 0.0
        %v2289 = vld [vmem:[%s9] sm:$0xff]
        %v2290 = vld [vmem:[%s9 + $0x8] sm:$0xff]
        %v2291 = vld [vmem:[%s9 + $0x10] sm:$0xff]
        %v2292 = vld [vmem:[%s9 + $0x18] sm:$0xff]
        %v2293 = vld [vmem:[%s9 + $0x20] sm:$0xff]
        %v2294 = vld [vmem:[%s9 + $0x28] sm:$0xff]
        %v2295 = vld [vmem:[%s9 + $0x30] sm:$0xff]
        %v2296 = vld [vmem:[%s9 + $0x38] sm:$0xff]
        %v2297 = vld [vmem:[%s9 + $0x40] sm:$0xff]
        %v2298 = vld [vmem:[%s9 + $0x48] sm:$0xff]
        %v2299 = vld [vmem:[%s9 + $0x50] sm:$0xf]
        %v2300 = vld [vmem:[%s10] sm:$0x1]
        %v2302 = vsel %vm1201, %v2288, 0
        %v2305 = vsel %vm945, %v2299, 0
        %2307 = vmatprep.subr.mxu0 0.0
        %2308 = vmatpush1.msra.mxu0 0.0
        %2309 = vmatprep.subr.mxu0 0.0
        %2310 = vmatpush1.msra.mxu0 0.0
        %2311 = vmatprep.subr.mxu0 0.0
        %2312 = vmatpush1.msra.mxu0 0.0
        %2313 = vmatprep.subr.mxu0 0.0
        %2314 = vmatpush1.msra.mxu0 0.0
        %2315 = vmatprep.subr.mxu0 0.0
        %2316 = vmatpush1.msra.mxu0 0.0
        %2317 = vmatprep.subr.mxu0 0.0
        %2318 = vmatpush1.msra.mxu0 %v2305
        %2319 = vmatprep.subr.mxu0 0.0
        %2320 = vmatpush1.msra.mxu0 %v2298
        %2321 = vmatprep.subr.mxu0 0.0
        %2322 = vmatpush1.msra.mxu0 %v2297
        %2323 = vmatprep.subr.mxu0 0.0
        %2324 = vmatpush1.msra.mxu0 %v2296
        %2325 = vmatprep.subr.mxu0 0.0
        %2326 = vmatpush1.msra.mxu0 %v2295
        %2327 = vmatprep.subr.mxu0 0.0
        %2328 = vmatpush1.msra.mxu0 %v2294
        %2329 = vmatprep.subr.mxu0 0.0
        %2330 = vmatpush1.msra.mxu0 %v2293
        %2331 = vmatprep.subr.mxu0 0.0
        %2332 = vmatpush1.msra.mxu0 %v2292
        %2333 = vmatprep.subr.mxu0 0.0
        %2334 = vmatpush1.msra.mxu0 %v2291
        %2335 = vmatprep.subr.mxu0 0.0
        %2336 = vmatpush1.msra.mxu0 %v2290
        %2337 = vmatprep.subr.mxu0 0.0
        %2338 = vmatpush1.msra.mxu0 %v2289
        %2339 = vmatprep.subr.mxu0 0.0
        %2340 = vmatpush2.msra.mxu0 0.0
        %2341 = vmatprep.subr.mxu0 0.0
        %2342 = vmatpush2.msra.mxu0 0.0
        %2343 = vmatprep.subr.mxu0 0.0
        %2344 = vmatpush2.msra.mxu0 0.0
        %2345 = vmatprep.subr.mxu0 0.0
        %2346 = vmatpush2.msra.mxu0 0.0
        %2347 = vmatprep.subr.mxu0 0.0
        %2348 = vmatpush2.msra.mxu0 0.0
        %2349 = vmatprep.subr.mxu0 0.0
        %2350 = vmatpush2.msra.mxu0 0.0
        %2351 = vmatprep.subr.mxu0 0.0
        %2352 = vmatpush2.msra.mxu0 0.0
        %2353 = vmatprep.subr.mxu0 0.0
        %2354 = vmatpush2.msra.mxu0 0.0
        %2355 = vmatprep.subr.mxu0 0.0
        %2356 = vmatpush2.msra.mxu0 0.0
        %2357 = vmatprep.subr.mxu0 0.0
        %2358 = vmatpush2.msra.mxu0 0.0
        %2359 = vmatprep.subr.mxu0 0.0
        %2360 = vmatpush2.msra.mxu0 0.0
        %2361 = vmatprep.subr.mxu0 0.0
        %2362 = vmatpush2.msra.mxu0 0.0
        %2363 = vmatprep.subr.mxu0 0.0
        %2364 = vmatpush2.msra.mxu0 0.0
        %2365 = vmatprep.subr.mxu0 0.0
        %2366 = vmatpush2.msra.mxu0 0.0
        %2367 = vmatprep.subr.mxu0 0.0
        %2368 = vmatpush2.msra.mxu0 0.0
        %2369 = vmatprep.subr.mxu0 0.0
        %2370 = vmatpush2.msra.mxu0 0.0
        %2371 = vmatprep.mubr.f32.mxu0 0.0
        %2372 = vmatmul.mubr.f32.gmra.mxu0 %v2302
        %v2373 = vpop.f32.mrf.mxu0
        %v2374 = vadd.f32 %v2300, %v2373
        %v2375 = vpop.f32.mrf.mxu0
        %2376 = vdwg.mxu0
        %vm2377 = vcmask 73728
        %2378 = vst.msk [vmem:[%s378] sm:$0x1] %vm2377, %v2374
        %s2379 = sand.u32 %s269, 1
        %s2380 = scalar_lea.sflag [#allocation4], %s2379
        %s2381 = sand.u32 %s269, 1
        %s2382 = scalar_lea.vmem [#allocation3], %s2381
        // Predicated region
        $region65: #{lenet_forward.1} parent=63 // pred_check
          %p2383 = pneg %p279
        $region66: #{lenet_forward.1} parent=63 // pred_check_branch
          %2385 = sbr.rel (%p2383) target = $region68
        $region67: #{lenet_forward.1} parent=63 // pred_region
          %s2387 = ssub.s32 16, 16
          %2388 = vsyncadd %s2380, %s2387
          %s2389 = smul.addr %s25, 16
          %s2390 = scalar_lea.hbm %s11, %s2389
          %s2392 = sshll.u32 %s2382, 4
          %s2393 = int_to_ptr.vmem [resolvable:$true] %s2392
          %2395 = dma.vmem_to_hbm [thread:$0]  %s2393, 16, %s2390, %s2380
        $region68: #{lenet_forward.1} parent=63 // pred_fallthru
          _
      $region64: #{lenet_forward.1} parent=5 // pred_fallthru
        _
      %p2396 = scmp.le.s32.totalorder 2, %s20
      // Predicated region
      $region69: #{lenet_forward.1} parent=5 // pred_check
        %p2397 = pneg %p2396
      $region70: #{lenet_forward.1} parent=5 // pred_check_branch
        %2399 = sbr.rel (%p2397) target = $region72
      $region71: #{lenet_forward.1} parent=5 // pred_region
        %s2400 = ssub.s32 %s20, 2
        // Predicated region
        $region73: #{lenet_forward.1} parent=71 // pred_check
          %p2401 = pneg %p285
        $region74: #{lenet_forward.1} parent=71 // pred_check_branch
          %2403 = sbr.rel (%p2401) target = $region76
        $region75: #{lenet_forward.1} parent=71 // pred_region
          %s2404 = sand.u32 %s270, 1
          %s2405 = scalar_lea.sflag [#allocation4], %s2404
          %s2406 = sand.u32 %s270, 1
          %s2407 = scalar_lea.vmem [#allocation3], %s2406
          %2408 = dma.done %s2405, 16
        $region76: #{lenet_forward.1} parent=71 // pred_fallthru
          _
      $region72: #{lenet_forward.1} parent=5 // pred_fallthru
        _
    $region6: #{lenet_forward.1} parent=1 // loop_footer
      %s24 = sadd.s32 1, %s20
    $region7: #{lenet_forward.1} parent=1 // loop_footer_branch
      %19 = sbr.rel target = $region3
    $region8: #{lenet_forward.1} parent=1 // loop_exit
      _
    %2409 = vsyncpa [#allocation4], 1
    %s2410 = scalar_lea.sflag [#allocation4], 1
    %2411 = vsyncpa %s2410, 1

</llo_original>
